<compile_context>
chip_gen: v7x
topology: tpu7x:2x2x1
jax: 0.10.0
libtpu: 0.0.40
codegen_flags: <defaults>
</compile_context>

<pallas_src>
import functools

import jax
import jax.numpy as jnp
from jax.experimental import pallas as pl
from jax.experimental.pallas import tpu as pltpu

_LANES = 128
# One-hot MXU gather costs O(n_rows * B); it only beats streaming gathered
# rows when the tables are small.
_FUSED_MAX_ROWS = 1024
# Conservative whole-table VMEM budget: safe on v7x (64 MiB physical, 32 MiB
# default scoped) as well as v5e/v6e (128 MiB).
_FUSED_TABLE_BUDGET = 16 << 20


def _round_up(x, m):
    return ((x + m - 1) // m) * m


def _table_vmem_bytes(n_rows, fp):
    # Transposed (fp, n_rows) f32 table: sublane/lane padded, double-buffered.
    return 2 * _round_up(fp, 8) * _round_up(n_rows, _LANES) * 4


# ---------------------------------------------------------------------------
# Kernels
# ---------------------------------------------------------------------------
def bpr_fused_kernel(ut_ref, it_ref, u_ref, p_ref, n_ref, out_ref):
    """Fully fused tile: in-kernel gather via one-hot MXU matmuls.

    ut_ref : (Fp, n_users) user table^T, last row = ones      (VMEM resident)
    it_ref : (Fp, n_items) item table^T, last row = item bias (VMEM resident)
    u/p/n  : (1, TB) int32 user / pos-item / neg-item ids (batch on lanes)
    out_ref: (1, TB) f32 scores (lane-dense)
    """
    nu = ut_ref.shape[1]
    ni = it_ref.shape[1]
    tb = out_ref.shape[1]
    hi = jax.lax.Precision.HIGHEST  # keep f32 table values exact through MXU

    u_iota = jax.lax.broadcasted_iota(jnp.int32, (nu, tb), 0)
    i_iota = jax.lax.broadcasted_iota(jnp.int32, (ni, tb), 0)
    u_oh = jnp.where(u_iota == u_ref[...], 1.0, 0.0).astype(jnp.float32)
    # Single one-hot carrying the pos-neg difference (one matmul, not two).
    d_oh = (jnp.where(i_iota == p_ref[...], 1.0, 0.0)
            - jnp.where(i_iota == n_ref[...], 1.0, 0.0)).astype(jnp.float32)

    ue = jnp.dot(ut_ref[...], u_oh, precision=hi,
                 preferred_element_type=jnp.float32)           # (Fp, TB)
    dd = jnp.dot(it_ref[...], d_oh, precision=hi,
                 preferred_element_type=jnp.float32)           # (Fp, TB)
    # Reduce over features (sublanes) -> lane-dense (1, TB) output row.
    # Bias is included via the ones row of ut and the bias row of it.
    out_ref[...] = jnp.sum(ue * dd, axis=0, keepdims=True)


def bpr_stream_kernel(ue_ref, pe_ref, ne_ref, bd_ref, out_ref):
    """Streaming tile over pre-gathered rows: fused diff + dot-reduce + bias.

    ue/pe/ne_ref : (TB, F) gathered user / pos-item / neg-item embedding rows
    bd_ref/out   : (TB, 1) item-bias diff / scores
    """
    d = pe_ref[...] - ne_ref[...]
    out_ref[...] = bd_ref[...] + jnp.sum(ue_ref[...] * d, axis=1, keepdims=True)


# ---------------------------------------------------------------------------
# Wrappers
# ---------------------------------------------------------------------------
def _bpr_fused(user_emb, item_emb, item_bias, users, pos_items, neg_items):
    n_users, F = user_emb.shape
    n_items = item_emb.shape[0]
    B = users.shape[0]
    Fp = F + 1

    # Fold the item bias into the dot: [item_emb | bias] . [user_emb | 1].
    ut = jnp.concatenate(
        [user_emb, jnp.ones((n_users, 1), jnp.float32)], axis=1).T  # (Fp, n_users)
    it = jnp.concatenate([item_emb, item_bias], axis=1).T           # (Fp, n_items)

    # Moderate batch tile: per-step HBM traffic is only indices + output, and
    # the (n_rows, tb) one-hot intermediates must stay small in VMEM.
    tb = min(512, _round_up(B, _LANES))
    b_pad = _round_up(B, tb)
    pad = b_pad - B
    u = jnp.pad(users.astype(jnp.int32), (0, pad)).reshape(1, b_pad)
    p = jnp.pad(pos_items.astype(jnp.int32), (0, pad)).reshape(1, b_pad)
    n = jnp.pad(neg_items.astype(jnp.int32), (0, pad)).reshape(1, b_pad)

    idx_spec = pl.BlockSpec((1, tb), lambda i: (0, i))
    table_bytes = _table_vmem_bytes(n_users, Fp) + _table_vmem_bytes(n_items, Fp)
    onehot_bytes = 2 * (n_users + n_items) * tb * 4
    vmem_limit = int(max(32 << 20,
                         min(48 << 20, table_bytes + onehot_bytes + (8 << 20))))
    cost = pl.CostEstimate(
        flops=2 * Fp * (n_users + n_items) * b_pad + 2 * Fp * b_pad,
        transcendentals=0,
        bytes_accessed=table_bytes // 2 + 4 * b_pad * 4)

    out = pl.pallas_call(
        bpr_fused_kernel,
        out_shape=jax.ShapeDtypeStruct((1, b_pad), jnp.float32),
        grid=(b_pad // tb,),
        in_specs=[
            pl.BlockSpec((Fp, n_users), lambda i: (0, 0)),  # whole table, resident
            pl.BlockSpec((Fp, n_items), lambda i: (0, 0)),  # whole table, resident
            idx_spec, idx_spec, idx_spec,
        ],
        out_specs=pl.BlockSpec((1, tb), lambda i: (0, i)),
        compiler_params=pltpu.CompilerParams(
            dimension_semantics=("parallel",),
            vmem_limit_bytes=vmem_limit),
        cost_estimate=cost,
    )(ut, it, u, p, n)
    return out[0, :B]


def _bpr_stream(user_emb, item_emb, item_bias, users, pos_items, neg_items, *,
                tile_b):
    _, F = user_emb.shape
    B = users.shape[0]

    # Large lane-padded batch tile to amortize the ~0.35us/grid-step overhead,
    # capped so (a) large batches keep >= 4 grid steps (v7x megacore sharding
    # of the "parallel" axis) and (b) the double-buffered footprint stays well
    # inside v7x's 64 MiB VMEM.
    tb = max(_LANES, min(_round_up(tile_b, _LANES),
                         _round_up(B, _LANES),
                         _round_up(max(B // 4, 1), _LANES)))
    b_pad = _round_up(B, tb)
    pad = b_pad - B
    u = jnp.pad(users.astype(jnp.int32), (0, pad))
    p = jnp.pad(pos_items.astype(jnp.int32), (0, pad))
    n = jnp.pad(neg_items.astype(jnp.int32), (0, pad))

    # Glue is row gathers only: each (b_pad, F) operand is written once by the
    # XLA gather fusion and read once by the kernel.  Diff, dot-reduce and bias
    # add all happen inside the kernel (no materialized transposes / diffs).
    ue = jnp.take(user_emb, u, axis=0)                          # (b_pad, F)
    pe = jnp.take(item_emb, p, axis=0)                          # (b_pad, F)
    ne = jnp.take(item_emb, n, axis=0)                          # (b_pad, F)
    bd = (jnp.take(item_bias, p, axis=0)
          - jnp.take(item_bias, n, axis=0))                     # (b_pad, 1)

    emb_spec = pl.BlockSpec((tb, F), lambda i: (i, 0))
    col_spec = pl.BlockSpec((tb, 1), lambda i: (i, 0))

    lane_f = _round_up(F, _LANES)
    footprint = 2 * (3 * tb * lane_f + 2 * tb * _LANES) * 4     # double-buffered
    vmem_limit = int(max(32 << 20, min(48 << 20, footprint + (4 << 20))))
    cost = pl.CostEstimate(
        flops=4 * F * b_pad,
        transcendentals=0,
        bytes_accessed=(3 * F + 2) * b_pad * 4)

    out = pl.pallas_call(
        bpr_stream_kernel,
        out_shape=jax.ShapeDtypeStruct((b_pad, 1), jnp.float32),
        grid=(b_pad // tb,),
        in_specs=[emb_spec, emb_spec, emb_spec, col_spec],
        out_specs=col_spec,
        compiler_params=pltpu.CompilerParams(
            dimension_semantics=("parallel",),
            vmem_limit_bytes=vmem_limit),
        cost_estimate=cost,
    )(ue, pe, ne, bd)
    return out[:B, 0]


@functools.partial(jax.jit, static_argnames=("mode", "tile_b"))
def bpr_forward(params, users, pos_items, neg_items, *, mode="auto", tile_b=4096):
    """BPRModule.forward: returns pos_preds - neg_preds, float32 (B,)."""
    user_emb = params["user_embeddings"].astype(jnp.float32)
    item_emb = params["item_embeddings"].astype(jnp.float32)
    item_bias = params["item_biases"].astype(jnp.float32)
    # NOTE: user_biases cancel in (pos - neg) and are never gathered; this
    # kernel is only valid for the BPR difference, not standalone predictions.

    n_users, F = user_emb.shape
    n_items = item_emb.shape[0]

    if mode == "auto":
        fp = F + 1
        fits = (_table_vmem_bytes(n_users, fp) + _table_vmem_bytes(n_items, fp)
                <= _FUSED_TABLE_BUDGET)
        small = max(n_users, n_items) <= _FUSED_MAX_ROWS
        mode = "fused" if (fits and small) else "stream"

    if mode == "fused":
        return _bpr_fused(user_emb, item_emb, item_bias,
                          users, pos_items, neg_items)
    if mode == "stream":
        return _bpr_stream(user_emb, item_emb, item_bias,
                           users, pos_items, neg_items, tile_b=tile_b)
    raise ValueError(f"unknown mode: {mode}")


def init_params(key, n_users, n_items, n_factors):
    """Deterministic init mirroring nn.Embedding's default N(0, 1)."""
    k1, k2, k3, k4 = jax.random.split(key, 4)
    return {
        "user_biases": jax.random.normal(k1, (n_users, 1), jnp.float32),
        "item_biases": jax.random.normal(k2, (n_items, 1), jnp.float32),
        "user_embeddings": jax.random.normal(k3, (n_users, n_factors), jnp.float32),
        "item_embeddings": jax.random.normal(k4, (n_items, n_factors), jnp.float32),
    }


if __name__ == "__main__":
    n_users, n_items, n_factors = 64, 128, 32
    B = 16

    key = jax.random.PRNGKey(0)
    pkey, ku, kp, kn = jax.random.split(key, 4)
    params = init_params(pkey, n_users, n_items, n_factors)

    users = jax.random.randint(ku, (B,), 0, n_users, dtype=jnp.int32)
    pos_items = jax.random.randint(kp, (B,), 0, n_items, dtype=jnp.int32)
    neg_items = jax.random.randint(kn, (B,), 0, n_items, dtype=jnp.int32)

    out_fused = bpr_forward(params, users, pos_items, neg_items)  # auto -> fused
    out_stream = bpr_forward(params, users, pos_items, neg_items, mode="stream")
    jax.block_until_ready((out_fused, out_stream))

    # Reference in plain JAX (full pos/neg incl. user_bias, which cancels).
    def ref_pred(u, i):
        return (params["user_biases"][u, 0] + params["item_biases"][i, 0]
                + jnp.sum(params["user_embeddings"][u]
                          * params["item_embeddings"][i], axis=-1))

    ref = ref_pred(users, pos_items) - ref_pred(users, neg_items)
    assert out_fused.shape == (B,) and out_stream.shape == (B,)
    assert jnp.allclose(out_fused, ref, atol=1e-4, rtol=1e-4)
    assert jnp.allclose(out_stream, ref, atol=1e-4, rtol=1e-4)

    print("KERNEL_OK")
</pallas_src>

<mosaic_0001>
module attributes {stable_mosaic.version = 11 : i64} {
  func.func @bpr_fused_kernel(%arg0: i32, %arg1: memref<33x64xf32, #tpu.memory_space<vmem>>, %arg2: memref<33x128xf32, #tpu.memory_space<vmem>>, %arg3: memref<1x128xi32, #tpu.memory_space<vmem>>, %arg4: memref<1x128xi32, #tpu.memory_space<vmem>>, %arg5: memref<1x128xi32, #tpu.memory_space<vmem>>, %arg6: memref<1x128xf32, #tpu.memory_space<vmem>>) attributes {dimension_semantics = [#tpu.dimension_semantics<parallel>], iteration_bounds = array<i64: 1>, scalar_prefetch = 0 : i64, scratch_operands = 0 : i64, tpu.core_type = #tpu.core_type<tc>, window_params = [{pipeline_mode = #tpu.pipeline_mode<synchronous>, transform_indices = @transform_0, window_bounds = array<i64: 33, 64>}, {pipeline_mode = #tpu.pipeline_mode<synchronous>, transform_indices = @transform_1, window_bounds = array<i64: 33, 128>}, {transform_indices = @transform_2, window_bounds = array<i64: 1, 128>}, {transform_indices = @transform_3, window_bounds = array<i64: 1, 128>}, {transform_indices = @transform_4, window_bounds = array<i64: 1, 128>}, {transform_indices = @transform_5, window_bounds = array<i64: 1, 128>}]} {
    %0 = tpu.iota {dimensions = array<i32: 0>} : vector<64x128xi32>
    %1 = tpu.iota {dimensions = array<i32: 0>} : vector<128x128xi32>
    %c0 = arith.constant 0 : index
    %c0_0 = arith.constant 0 : index
    %2 = vector.load %arg3[%c0, %c0_0] : memref<1x128xi32, #tpu.memory_space<vmem>>, vector<1x128xi32>
    %3 = vector.broadcast %2 : vector<1x128xi32> to vector<64x128xi32>
    %4 = arith.cmpi eq, %0, %3 : vector<64x128xi32>
    %cst = arith.constant 1.000000e+00 : f32
    %cst_1 = arith.constant 0.000000e+00 : f32
    %5 = vector.broadcast %cst : f32 to vector<64x128xf32>
    %6 = vector.broadcast %cst_1 : f32 to vector<64x128xf32>
    %7 = arith.select %4, %5, %6 : vector<64x128xi1>, vector<64x128xf32>
    %c0_2 = arith.constant 0 : index
    %c0_3 = arith.constant 0 : index
    %8 = vector.load %arg4[%c0_2, %c0_3] : memref<1x128xi32, #tpu.memory_space<vmem>>, vector<1x128xi32>
    %9 = vector.broadcast %8 : vector<1x128xi32> to vector<128x128xi32>
    %10 = arith.cmpi eq, %1, %9 : vector<128x128xi32>
    %cst_4 = arith.constant 1.000000e+00 : f32
    %cst_5 = arith.constant 0.000000e+00 : f32
    %11 = vector.broadcast %cst_4 : f32 to vector<128x128xf32>
    %12 = vector.broadcast %cst_5 : f32 to vector<128x128xf32>
    %13 = arith.select %10, %11, %12 : vector<128x128xi1>, vector<128x128xf32>
    %c0_6 = arith.constant 0 : index
    %c0_7 = arith.constant 0 : index
    %14 = vector.load %arg5[%c0_6, %c0_7] : memref<1x128xi32, #tpu.memory_space<vmem>>, vector<1x128xi32>
    %15 = vector.broadcast %14 : vector<1x128xi32> to vector<128x128xi32>
    %16 = arith.cmpi eq, %1, %15 : vector<128x128xi32>
    %cst_8 = arith.constant 1.000000e+00 : f32
    %cst_9 = arith.constant 0.000000e+00 : f32
    %17 = vector.broadcast %cst_8 : f32 to vector<128x128xf32>
    %18 = vector.broadcast %cst_9 : f32 to vector<128x128xf32>
    %19 = arith.select %16, %17, %18 : vector<128x128xi1>, vector<128x128xf32>
    %20 = arith.subf %13, %19 : vector<128x128xf32>
    %c0_10 = arith.constant 0 : index
    %c0_11 = arith.constant 0 : index
    %21 = vector.load %arg1[%c0_10, %c0_11] : memref<33x64xf32, #tpu.memory_space<vmem>>, vector<33x64xf32>
    %cst_12 = arith.constant dense<0.000000e+00> : vector<33x128xf32>
    %22 = tpu.matmul %21, %7, %cst_12 {dimension_numbers = #tpu.dot_dimension_numbers<[1], [0], [0], [1], [0, 0, 1, 1], [], []>, precision = #tpu.contract_precision<fp32>} : vector<33x64xf32>, vector<64x128xf32>, vector<33x128xf32> -> vector<33x128xf32>
    %c0_13 = arith.constant 0 : index
    %c0_14 = arith.constant 0 : index
    %23 = vector.load %arg2[%c0_13, %c0_14] : memref<33x128xf32, #tpu.memory_space<vmem>>, vector<33x128xf32>
    %cst_15 = arith.constant dense<0.000000e+00> : vector<33x128xf32>
    %24 = tpu.matmul %23, %20, %cst_15 {dimension_numbers = #tpu.dot_dimension_numbers<[1], [0], [0], [1], [0, 0, 1, 1], [], []>, precision = #tpu.contract_precision<fp32>} : vector<33x128xf32>, vector<128x128xf32>, vector<33x128xf32> -> vector<33x128xf32>
    %25 = arith.mulf %22, %24 : vector<33x128xf32>
    %cst_16 = arith.constant dense<0.000000e+00> : vector<128xf32>
    %26 = vector.multi_reduction <add>, %25, %cst_16 [0] : vector<33x128xf32> to vector<128xf32>
    %27 = vector.shape_cast %26 : vector<128xf32> to vector<1x128xf32>
    %c0_17 = arith.constant 0 : index
    %c0_18 = arith.constant 0 : index
    %28 = vector.load %arg6[%c0_17, %c0_18] : memref<1x128xf32, #tpu.memory_space<vmem>>, vector<1x128xf32>
    tpu.vector_store %arg6[%c0_17, %c0_18], %27 {strides = array<i32>} : memref<1x128xf32, #tpu.memory_space<vmem>>, vector<1x128xf32>,
    return
  }
  func.func @transform_0(%arg0: i32) -> (i32, i32) {
    %c0_i32 = arith.constant 0 : i32
    %c0_i32_0 = arith.constant 0 : i32
    %c0_i32_1 = arith.constant 0 : i32
    return %c0_i32, %c0_i32_0 : i32, i32
  }
  func.func @transform_1(%arg0: i32) -> (i32, i32) {
    %c0_i32 = arith.constant 0 : i32
    %c0_i32_0 = arith.constant 0 : i32
    %c0_i32_1 = arith.constant 0 : i32
    return %c0_i32, %c0_i32_0 : i32, i32
  }
  func.func @transform_2(%arg0: i32) -> (i32, i32) {
    %c0_i32 = arith.constant 0 : i32
    %c0_i32_0 = arith.constant 0 : i32
    return %c0_i32, %arg0 : i32, i32
  }
  func.func @transform_3(%arg0: i32) -> (i32, i32) {
    %c0_i32 = arith.constant 0 : i32
    %c0_i32_0 = arith.constant 0 : i32
    return %c0_i32, %arg0 : i32, i32
  }
  func.func @transform_4(%arg0: i32) -> (i32, i32) {
    %c0_i32 = arith.constant 0 : i32
    %c0_i32_0 = arith.constant 0 : i32
    return %c0_i32, %arg0 : i32, i32
  }
  func.func @transform_5(%arg0: i32) -> (i32, i32) {
    %c0_i32 = arith.constant 0 : i32
    %c0_i32_0 = arith.constant 0 : i32
    return %c0_i32, %arg0 : i32, i32
  }
}

</mosaic_0001>

<llo_original>
// kernel: bpr_forward.1
$region0: #{bpr_forward.1}
  #allocation0 [shape = 'u32[]', space=smem, size = 0x4, offset = 0x4, fixed_abs, tag = 'smem constant byte address 0x4 - core index']
  #allocation1 [shape = 'u32[144,128]{1,0:T(1,128)}', space=vmem, size = 0x12000, scoped, tag = 'internal scratch']
  %s0 = inlined_call_operand.vmem [shape: f32[33,64], index: 0, kind: input, shape index: {}]
  %s1 = inlined_call_operand.vmem [shape: f32[33,128], index: 1, kind: input, shape index: {}]
  %s2 = inlined_call_operand.vmem [shape: s32[1,128], index: 2, kind: input, shape index: {}]
  %s3 = inlined_call_operand.vmem [shape: s32[1,128], index: 3, kind: input, shape index: {}]
  %s4 = inlined_call_operand.vmem [shape: s32[1,128], index: 4, kind: input, shape index: {}]
  %s5 = inlined_call_operand.vmem [shape: f32[1,128], index: 5, kind: output, shape index: {}]
  %s6 = sld [smem:[#allocation0]]
  $region30: #{bpr_forward.1} parent=0
    _
  %s8 = ssub.s32 1, %s6
  %s9 = scalar_select 0, %s8, %s6
  // Predicated region
  $region2: #{bpr_forward.1} parent=0 // pred_check
    _
  $region3: #{bpr_forward.1} parent=0 // pred_check_branch
    %11 = sbr.rel (0) target = $region5
  $region4: #{bpr_forward.1} parent=0 // pred_region
    _
  $region5: #{bpr_forward.1} parent=0 // pred_fallthru
    _
  // Predicated region
  $region6: #{bpr_forward.1} parent=0 // pred_check
    _
  $region7: #{bpr_forward.1} parent=0 // pred_check_branch
    %13 = sbr.rel (0) target = $region9
  $region8: #{bpr_forward.1} parent=0 // pred_region
    _
  $region9: #{bpr_forward.1} parent=0 // pred_fallthru
    _
  // Predicated region
  $region10: #{bpr_forward.1} parent=0 // pred_check
    _
  $region11: #{bpr_forward.1} parent=0 // pred_check_branch
    %15 = sbr.rel (0) target = $region13
  $region12: #{bpr_forward.1} parent=0 // pred_region
    _
  $region13: #{bpr_forward.1} parent=0 // pred_fallthru
    _
  // Predicated region
  $region14: #{bpr_forward.1} parent=0 // pred_check
    _
  $region15: #{bpr_forward.1} parent=0 // pred_check_branch
    %17 = sbr.rel (0) target = $region17
  $region16: #{bpr_forward.1} parent=0 // pred_region
    _
  $region17: #{bpr_forward.1} parent=0 // pred_fallthru
    _
  // Predicated region
  $region18: #{bpr_forward.1} parent=0 // pred_check
    _
  $region19: #{bpr_forward.1} parent=0 // pred_check_branch
    %19 = sbr.rel (0) target = $region21
  $region20: #{bpr_forward.1} parent=0 // pred_region
    _
  $region21: #{bpr_forward.1} parent=0 // pred_fallthru
    _
  %v20 = vlaneseq
  %v21 = vshrl.u32 %v20, 7
  %v22 = vadd.s32 %v21, 8
  %v23 = vadd.s32 %v21, 16
  %v24 = vadd.s32 %v21, 24
  %v25 = vadd.s32 %v21, 32
  %v26 = vadd.s32 %v21, 40
  %v27 = vadd.s32 %v21, 48
  %v28 = vadd.s32 %v21, 56
  %v29 = vadd.s32 %v21, 64
  %v30 = vadd.s32 %v21, 72
  %v31 = vadd.s32 %v21, 80
  %v32 = vadd.s32 %v21, 88
  %v33 = vadd.s32 %v21, 96
  %v34 = vadd.s32 %v21, 104
  %v35 = vadd.s32 %v21, 112
  %v36 = vadd.s32 %v21, 120
  %v37 = vld [vmem:[%s2] sm:$0x1]
  %v38 = vlaneseq
  %v39 = vshrl.u32 %v38, 7
  %v40 = vsub.s32 0, %v39
  %v41 = vrot.slane %v37, %v40
  %vm42 = vcmp.eq.s32.totalorder %v21, %v41
  %vm43 = vcmp.eq.s32.totalorder %v22, %v41
  %vm44 = vcmp.eq.s32.totalorder %v23, %v41
  %vm45 = vcmp.eq.s32.totalorder %v24, %v41
  %vm46 = vcmp.eq.s32.totalorder %v25, %v41
  %vm47 = vcmp.eq.s32.totalorder %v26, %v41
  %vm48 = vcmp.eq.s32.totalorder %v27, %v41
  %vm49 = vcmp.eq.s32.totalorder %v28, %v41
  %v50 = vsel %vm42, 1.0, 0.0
  %v51 = vsel %vm43, 1.0, 0.0
  %v52 = vsel %vm44, 1.0, 0.0
  %v53 = vsel %vm45, 1.0, 0.0
  %v54 = vsel %vm46, 1.0, 0.0
  %v55 = vsel %vm47, 1.0, 0.0
  %v56 = vsel %vm48, 1.0, 0.0
  %v57 = vsel %vm49, 1.0, 0.0
  %v58 = vld [vmem:[%s3] sm:$0x1]
  %v59 = vlaneseq
  %v60 = vshrl.u32 %v59, 7
  %v61 = vsub.s32 0, %v60
  %v62 = vrot.slane %v58, %v61
  %vm63 = vcmp.eq.s32.totalorder %v21, %v62
  %vm64 = vcmp.eq.s32.totalorder %v22, %v62
  %vm65 = vcmp.eq.s32.totalorder %v23, %v62
  %vm66 = vcmp.eq.s32.totalorder %v24, %v62
  %vm67 = vcmp.eq.s32.totalorder %v25, %v62
  %vm68 = vcmp.eq.s32.totalorder %v26, %v62
  %vm69 = vcmp.eq.s32.totalorder %v27, %v62
  %vm70 = vcmp.eq.s32.totalorder %v28, %v62
  %vm71 = vcmp.eq.s32.totalorder %v29, %v62
  %vm72 = vcmp.eq.s32.totalorder %v30, %v62
  %vm73 = vcmp.eq.s32.totalorder %v31, %v62
  %vm74 = vcmp.eq.s32.totalorder %v32, %v62
  %vm75 = vcmp.eq.s32.totalorder %v33, %v62
  %vm76 = vcmp.eq.s32.totalorder %v34, %v62
  %vm77 = vcmp.eq.s32.totalorder %v35, %v62
  %vm78 = vcmp.eq.s32.totalorder %v36, %v62
  %v79 = vsel %vm63, 1.0, 0.0
  %v80 = vsel %vm64, 1.0, 0.0
  %v81 = vsel %vm65, 1.0, 0.0
  %v82 = vsel %vm66, 1.0, 0.0
  %v83 = vsel %vm67, 1.0, 0.0
  %v84 = vsel %vm68, 1.0, 0.0
  %v85 = vsel %vm69, 1.0, 0.0
  %v86 = vsel %vm70, 1.0, 0.0
  %v87 = vsel %vm71, 1.0, 0.0
  %v88 = vsel %vm72, 1.0, 0.0
  %v89 = vsel %vm73, 1.0, 0.0
  %v90 = vsel %vm74, 1.0, 0.0
  %v91 = vsel %vm75, 1.0, 0.0
  %v92 = vsel %vm76, 1.0, 0.0
  %v93 = vsel %vm77, 1.0, 0.0
  %v94 = vsel %vm78, 1.0, 0.0
  %v95 = vld [vmem:[%s4] sm:$0x1]
  %v96 = vlaneseq
  %v97 = vshrl.u32 %v96, 7
  %v98 = vsub.s32 0, %v97
  %v99 = vrot.slane %v95, %v98
  %vm100 = vcmp.eq.s32.totalorder %v21, %v99
  %vm101 = vcmp.eq.s32.totalorder %v22, %v99
  %vm102 = vcmp.eq.s32.totalorder %v23, %v99
  %vm103 = vcmp.eq.s32.totalorder %v24, %v99
  %vm104 = vcmp.eq.s32.totalorder %v25, %v99
  %vm105 = vcmp.eq.s32.totalorder %v26, %v99
  %vm106 = vcmp.eq.s32.totalorder %v27, %v99
  %vm107 = vcmp.eq.s32.totalorder %v28, %v99
  %vm108 = vcmp.eq.s32.totalorder %v29, %v99
  %vm109 = vcmp.eq.s32.totalorder %v30, %v99
  %vm110 = vcmp.eq.s32.totalorder %v31, %v99
  %vm111 = vcmp.eq.s32.totalorder %v32, %v99
  %vm112 = vcmp.eq.s32.totalorder %v33, %v99
  %vm113 = vcmp.eq.s32.totalorder %v34, %v99
  %vm114 = vcmp.eq.s32.totalorder %v35, %v99
  %vm115 = vcmp.eq.s32.totalorder %v36, %v99
  %v116 = vsel %vm100, 1.0, 0.0
  %v117 = vsel %vm101, 1.0, 0.0
  %v118 = vsel %vm102, 1.0, 0.0
  %v119 = vsel %vm103, 1.0, 0.0
  %v120 = vsel %vm104, 1.0, 0.0
  %v121 = vsel %vm105, 1.0, 0.0
  %v122 = vsel %vm106, 1.0, 0.0
  %v123 = vsel %vm107, 1.0, 0.0
  %v124 = vsel %vm108, 1.0, 0.0
  %v125 = vsel %vm109, 1.0, 0.0
  %v126 = vsel %vm110, 1.0, 0.0
  %v127 = vsel %vm111, 1.0, 0.0
  %v128 = vsel %vm112, 1.0, 0.0
  %v129 = vsel %vm113, 1.0, 0.0
  %v130 = vsel %vm114, 1.0, 0.0
  %v131 = vsel %vm115, 1.0, 0.0
  %v132 = vsub.f32 %v79, %v116
  %v133 = vsub.f32 %v80, %v117
  %v134 = vsub.f32 %v81, %v118
  %v135 = vsub.f32 %v82, %v119
  %v136 = vsub.f32 %v83, %v120
  %v137 = vsub.f32 %v84, %v121
  %v138 = vsub.f32 %v85, %v122
  %v139 = vsub.f32 %v86, %v123
  %v140 = vsub.f32 %v87, %v124
  %v141 = vsub.f32 %v88, %v125
  %v142 = vsub.f32 %v89, %v126
  %v143 = vsub.f32 %v90, %v127
  %v144 = vsub.f32 %v91, %v128
  %v145 = vsub.f32 %v92, %v129
  %v146 = vsub.f32 %v93, %v130
  %v147 = vsub.f32 %v94, %v131
  %v148 = vld [vmem:[%s0] sm:$0xff]
  %v149 = vld [vmem:[%s0 + $0x8] sm:$0xff]
  %v150 = vld [vmem:[%s0 + $0x10] sm:$0xff]
  %v151 = vld [vmem:[%s0 + $0x18] sm:$0xff]
  %v152 = vld [vmem:[%s0 + $0x20] sm:$0x1]
  %vm153 = vcmask 523264
  %v155 = vsel %vm153, %v148, 0
  %v158 = vsel %vm153, %v149, 0
  %v161 = vsel %vm153, %v150, 0
  %v164 = vsel %vm153, %v151, 0
  %v167 = vsel %vm153, %v152, 0
  %169 = vmatprep.subr.mxu0 0.0
  %170 = vmatpush1.msra.mxu0 %v50
  %171 = vmatprep.subr.mxu0 0.0
  %172 = vmatpush1.msra.mxu0 %v51
  %173 = vmatprep.subr.mxu0 0.0
  %174 = vmatpush1.msra.mxu0 %v52
  %175 = vmatprep.subr.mxu0 0.0
  %176 = vmatpush1.msra.mxu0 %v53
  %177 = vmatprep.subr.mxu0 0.0
  %178 = vmatpush1.msra.mxu0 %v54
  %179 = vmatprep.subr.mxu0 0.0
  %180 = vmatpush1.msra.mxu0 %v55
  %181 = vmatprep.subr.mxu0 0.0
  %182 = vmatpush1.msra.mxu0 %v56
  %183 = vmatprep.subr.mxu0 0.0
  %184 = vmatpush1.msra.mxu0 %v57
  %185 = vmatprep.subr.mxu0 0.0
  %186 = vmatpush1.msra.mxu0 0.0
  %187 = vmatprep.subr.mxu0 0.0
  %188 = vmatpush1.msra.mxu0 0.0
  %189 = vmatprep.subr.mxu0 0.0
  %190 = vmatpush1.msra.mxu0 0.0
  %191 = vmatprep.subr.mxu0 0.0
  %192 = vmatpush1.msra.mxu0 0.0
  %193 = vmatprep.subr.mxu0 0.0
  %194 = vmatpush1.msra.mxu0 0.0
  %195 = vmatprep.subr.mxu0 0.0
  %196 = vmatpush1.msra.mxu0 0.0
  %197 = vmatprep.subr.mxu0 0.0
  %198 = vmatpush1.msra.mxu0 0.0
  %199 = vmatprep.subr.mxu0 0.0
  %200 = vmatpush1.msra.mxu0 0.0
  %201 = vmatprep.subr.mxu0 0.0
  %202 = vmatpush1.msra.mxu0 0.0
  %203 = vmatprep.subr.mxu0 0.0
  %204 = vmatpush1.msra.mxu0 0.0
  %205 = vmatprep.subr.mxu0 0.0
  %206 = vmatpush1.msra.mxu0 0.0
  %207 = vmatprep.subr.mxu0 0.0
  %208 = vmatpush1.msra.mxu0 0.0
  %209 = vmatprep.subr.mxu0 0.0
  %210 = vmatpush1.msra.mxu0 0.0
  %211 = vmatprep.subr.mxu0 0.0
  %212 = vmatpush1.msra.mxu0 0.0
  %213 = vmatprep.subr.mxu0 0.0
  %214 = vmatpush1.msra.mxu0 0.0
  %215 = vmatprep.subr.mxu0 0.0
  %216 = vmatpush1.msra.mxu0 0.0
  %217 = vmatprep.subr.mxu0 0.0
  %218 = vmatpush1.msra.mxu0 0.0
  %219 = vmatprep.subr.mxu0 0.0
  %220 = vmatpush1.msra.mxu0 0.0
  %221 = vmatprep.subr.mxu0 0.0
  %222 = vmatpush1.msra.mxu0 0.0
  %223 = vmatprep.subr.mxu0 0.0
  %224 = vmatpush1.msra.mxu0 0.0
  %225 = vmatprep.subr.mxu0 0.0
  %226 = vmatpush1.msra.mxu0 0.0
  %227 = vmatprep.subr.mxu0 0.0
  %228 = vmatpush1.msra.mxu0 0.0
  %229 = vmatprep.subr.mxu0 0.0
  %230 = vmatpush1.msra.mxu0 0.0
  %231 = vmatprep.subr.mxu0 0.0
  %232 = vmatpush1.msra.mxu0 0.0
  %233 = vmatprep.mubr.f32.mxu0 0.0
  %v234 = vand.u32 %v155, 4294901760
  %v235 = vsub.f32 %v155, %v234
  %v236 = vand.u32 %v235, 4294901760
  %v237 = vsub.f32 %v235, %v236
  %v238 = vand.u32 %v237, 4294901760
  %239 = vmatmul.mubr.f32.gmra.mrb[0].mxu0 %v238
  %v240 = vpop.f32.mrb[0].mxu0
  %v241 = vadd.f32 0.0, %v240
  %v242 = vpop.f32.mrb[0].mxu0
  %243 = vmatprep.mubr.f32.mxu0 0.0
  %v244 = vand.u32 %v158, 4294901760
  %v245 = vsub.f32 %v158, %v244
  %v246 = vand.u32 %v245, 4294901760
  %v247 = vsub.f32 %v245, %v246
  %v248 = vand.u32 %v247, 4294901760
  %249 = vmatmul.mubr.f32.gmra.mrb[0].mxu0 %v248
  %v250 = vpop.f32.mrb[0].mxu0
  %v251 = vadd.f32 0.0, %v250
  %v252 = vpop.f32.mrb[0].mxu0
  %253 = vmatprep.mubr.f32.mxu0 0.0
  %v254 = vand.u32 %v161, 4294901760
  %v255 = vsub.f32 %v161, %v254
  %v256 = vand.u32 %v255, 4294901760
  %v257 = vsub.f32 %v255, %v256
  %v258 = vand.u32 %v257, 4294901760
  %259 = vmatmul.mubr.f32.gmra.mrb[0].mxu0 %v258
  %v260 = vpop.f32.mrb[0].mxu0
  %v261 = vadd.f32 0.0, %v260
  %v262 = vpop.f32.mrb[0].mxu0
  %263 = vmatprep.mubr.f32.mxu0 0.0
  %v264 = vand.u32 %v164, 4294901760
  %v265 = vsub.f32 %v164, %v264
  %v266 = vand.u32 %v265, 4294901760
  %v267 = vsub.f32 %v265, %v266
  %v268 = vand.u32 %v267, 4294901760
  %269 = vmatmul.mubr.f32.gmra.mrb[0].mxu0 %v268
  %v270 = vpop.f32.mrb[0].mxu0
  %v271 = vadd.f32 0.0, %v270
  %v272 = vpop.f32.mrb[0].mxu0
  %273 = vmatprep.mubr.f32.mxu0 0.0
  %v274 = vand.u32 %v167, 4294901760
  %v275 = vsub.f32 %v167, %v274
  %v276 = vand.u32 %v275, 4294901760
  %v277 = vsub.f32 %v275, %v276
  %v278 = vand.u32 %v277, 4294901760
  %279 = vmatmul.mubr.f32.gmra.mrb[0].mxu0 %v278
  %v280 = vpop.f32.mrb[0].mxu0
  %v281 = vadd.f32 0.0, %v280
  %v282 = vpop.f32.mrb[0].mxu0
  %283 = vdwg.mxu0
  %284 = vmatprep.subr.mxu0 0.0
  %v285 = vsub.f32 %v50, %v50
  %v286 = vand.u32 %v285, 4294901760
  %v287 = vsub.f32 %v285, %v286
  %v288 = vand.u32 %v287, 4294901760
  %289 = vmatpush1.msra.mxu0 %v288
  %290 = vmatprep.subr.mxu0 0.0
  %v291 = vsub.f32 %v51, %v51
  %v292 = vand.u32 %v291, 4294901760
  %v293 = vsub.f32 %v291, %v292
  %v294 = vand.u32 %v293, 4294901760
  %295 = vmatpush1.msra.mxu0 %v294
  %296 = vmatprep.subr.mxu0 0.0
  %v297 = vsub.f32 %v52, %v52
  %v298 = vand.u32 %v297, 4294901760
  %v299 = vsub.f32 %v297, %v298
  %v300 = vand.u32 %v299, 4294901760
  %301 = vmatpush1.msra.mxu0 %v300
  %302 = vmatprep.subr.mxu0 0.0
  %v303 = vsub.f32 %v53, %v53
  %v304 = vand.u32 %v303, 4294901760
  %v305 = vsub.f32 %v303, %v304
  %v306 = vand.u32 %v305, 4294901760
  %307 = vmatpush1.msra.mxu0 %v306
  %308 = vmatprep.subr.mxu0 0.0
  %v309 = vsub.f32 %v54, %v54
  %v310 = vand.u32 %v309, 4294901760
  %v311 = vsub.f32 %v309, %v310
  %v312 = vand.u32 %v311, 4294901760
  %313 = vmatpush1.msra.mxu0 %v312
  %314 = vmatprep.subr.mxu0 0.0
  %v315 = vsub.f32 %v55, %v55
  %v316 = vand.u32 %v315, 4294901760
  %v317 = vsub.f32 %v315, %v316
  %v318 = vand.u32 %v317, 4294901760
  %319 = vmatpush1.msra.mxu0 %v318
  %320 = vmatprep.subr.mxu0 0.0
  %v321 = vsub.f32 %v56, %v56
  %v322 = vand.u32 %v321, 4294901760
  %v323 = vsub.f32 %v321, %v322
  %v324 = vand.u32 %v323, 4294901760
  %325 = vmatpush1.msra.mxu0 %v324
  %326 = vmatprep.subr.mxu0 0.0
  %v327 = vsub.f32 %v57, %v57
  %v328 = vand.u32 %v327, 4294901760
  %v329 = vsub.f32 %v327, %v328
  %v330 = vand.u32 %v329, 4294901760
  %331 = vmatpush1.msra.mxu0 %v330
  %332 = vmatprep.subr.mxu0 0.0
  %333 = vmatpush1.msra.mxu0 0.0
  %334 = vmatprep.subr.mxu0 0.0
  %335 = vmatpush1.msra.mxu0 0.0
  %336 = vmatprep.subr.mxu0 0.0
  %337 = vmatpush1.msra.mxu0 0.0
  %338 = vmatprep.subr.mxu0 0.0
  %339 = vmatpush1.msra.mxu0 0.0
  %340 = vmatprep.subr.mxu0 0.0
  %341 = vmatpush1.msra.mxu0 0.0
  %342 = vmatprep.subr.mxu0 0.0
  %343 = vmatpush1.msra.mxu0 0.0
  %344 = vmatprep.subr.mxu0 0.0
  %345 = vmatpush1.msra.mxu0 0.0
  %346 = vmatprep.subr.mxu0 0.0
  %347 = vmatpush1.msra.mxu0 0.0
  %348 = vmatprep.subr.mxu0 0.0
  %349 = vmatpush1.msra.mxu0 0.0
  %350 = vmatprep.subr.mxu0 0.0
  %351 = vmatpush1.msra.mxu0 0.0
  %352 = vmatprep.subr.mxu0 0.0
  %353 = vmatpush1.msra.mxu0 0.0
  %354 = vmatprep.subr.mxu0 0.0
  %355 = vmatpush1.msra.mxu0 0.0
  %356 = vmatprep.subr.mxu0 0.0
  %357 = vmatpush1.msra.mxu0 0.0
  %358 = vmatprep.subr.mxu0 0.0
  %359 = vmatpush1.msra.mxu0 0.0
  %360 = vmatprep.subr.mxu0 0.0
  %361 = vmatpush1.msra.mxu0 0.0
  %362 = vmatprep.subr.mxu0 0.0
  %363 = vmatpush1.msra.mxu0 0.0
  %364 = vmatprep.subr.mxu0 0.0
  %365 = vmatpush1.msra.mxu0 0.0
  %366 = vmatprep.subr.mxu0 0.0
  %367 = vmatpush1.msra.mxu0 0.0
  %368 = vmatprep.subr.mxu0 0.0
  %369 = vmatpush1.msra.mxu0 0.0
  %370 = vmatprep.subr.mxu0 0.0
  %371 = vmatpush1.msra.mxu0 0.0
  %372 = vmatprep.subr.mxu0 0.0
  %373 = vmatpush1.msra.mxu0 0.0
  %374 = vmatprep.subr.mxu0 0.0
  %375 = vmatpush1.msra.mxu0 0.0
  %376 = vmatprep.subr.mxu0 0.0
  %377 = vmatpush1.msra.mxu0 0.0
  %378 = vmatprep.subr.mxu0 0.0
  %379 = vmatpush1.msra.mxu0 0.0
  %380 = vmatprep.mubr.f32.mxu0 0.0
  %v381 = vand.u32 %v155, 4294901760
  %382 = vmatmul.mubr.f32.gmra.mrb[0].mxu0 %v381
  %v383 = vpop.f32.mrb[0].mxu0
  %v384 = vadd.f32 %v241, %v383
  %v385 = vpop.f32.mrb[0].mxu0
  %386 = vmatprep.mubr.f32.mxu0 0.0
  %v387 = vand.u32 %v158, 4294901760
  %388 = vmatmul.mubr.f32.gmra.mrb[0].mxu0 %v387
  %v389 = vpop.f32.mrb[0].mxu0
  %v390 = vadd.f32 %v251, %v389
  %v391 = vpop.f32.mrb[0].mxu0
  %392 = vmatprep.mubr.f32.mxu0 0.0
  %v393 = vand.u32 %v161, 4294901760
  %394 = vmatmul.mubr.f32.gmra.mrb[0].mxu0 %v393
  %v395 = vpop.f32.mrb[0].mxu0
  %v396 = vadd.f32 %v261, %v395
  %v397 = vpop.f32.mrb[0].mxu0
  %398 = vmatprep.mubr.f32.mxu0 0.0
  %v399 = vand.u32 %v164, 4294901760
  %400 = vmatmul.mubr.f32.gmra.mrb[0].mxu0 %v399
  %v401 = vpop.f32.mrb[0].mxu0
  %v402 = vadd.f32 %v271, %v401
  %v403 = vpop.f32.mrb[0].mxu0
  %404 = vmatprep.mubr.f32.mxu0 0.0
  %v405 = vand.u32 %v167, 4294901760
  %406 = vmatmul.mubr.f32.gmra.mrb[0].mxu0 %v405
  %v407 = vpop.f32.mrb[0].mxu0
  %v408 = vadd.f32 %v281, %v407
  %v409 = vpop.f32.mrb[0].mxu0
  %410 = vdwg.mxu0
  %411 = vmatprep.subr.mxu0 0.0
  %v412 = vsub.f32 %v50, %v50
  %413 = vmatpush1.msra.mxu0 %v412
  %414 = vmatprep.subr.mxu0 0.0
  %v415 = vsub.f32 %v51, %v51
  %416 = vmatpush1.msra.mxu0 %v415
  %417 = vmatprep.subr.mxu0 0.0
  %v418 = vsub.f32 %v52, %v52
  %419 = vmatpush1.msra.mxu0 %v418
  %420 = vmatprep.subr.mxu0 0.0
  %v421 = vsub.f32 %v53, %v53
  %422 = vmatpush1.msra.mxu0 %v421
  %423 = vmatprep.subr.mxu0 0.0
  %v424 = vsub.f32 %v54, %v54
  %425 = vmatpush1.msra.mxu0 %v424
  %426 = vmatprep.subr.mxu0 0.0
  %v427 = vsub.f32 %v55, %v55
  %428 = vmatpush1.msra.mxu0 %v427
  %429 = vmatprep.subr.mxu0 0.0
  %v430 = vsub.f32 %v56, %v56
  %431 = vmatpush1.msra.mxu0 %v430
  %432 = vmatprep.subr.mxu0 0.0
  %v433 = vsub.f32 %v57, %v57
  %434 = vmatpush1.msra.mxu0 %v433
  %435 = vmatprep.subr.mxu0 0.0
  %436 = vmatpush1.msra.mxu0 0.0
  %437 = vmatprep.subr.mxu0 0.0
  %438 = vmatpush1.msra.mxu0 0.0
  %439 = vmatprep.subr.mxu0 0.0
  %440 = vmatpush1.msra.mxu0 0.0
  %441 = vmatprep.subr.mxu0 0.0
  %442 = vmatpush1.msra.mxu0 0.0
  %443 = vmatprep.subr.mxu0 0.0
  %444 = vmatpush1.msra.mxu0 0.0
  %445 = vmatprep.subr.mxu0 0.0
  %446 = vmatpush1.msra.mxu0 0.0
  %447 = vmatprep.subr.mxu0 0.0
  %448 = vmatpush1.msra.mxu0 0.0
  %449 = vmatprep.subr.mxu0 0.0
  %450 = vmatpush1.msra.mxu0 0.0
  %451 = vmatprep.subr.mxu0 0.0
  %452 = vmatpush1.msra.mxu0 0.0
  %453 = vmatprep.subr.mxu0 0.0
  %454 = vmatpush1.msra.mxu0 0.0
  %455 = vmatprep.subr.mxu0 0.0
  %456 = vmatpush1.msra.mxu0 0.0
  %457 = vmatprep.subr.mxu0 0.0
  %458 = vmatpush1.msra.mxu0 0.0
  %459 = vmatprep.subr.mxu0 0.0
  %460 = vmatpush1.msra.mxu0 0.0
  %461 = vmatprep.subr.mxu0 0.0
  %462 = vmatpush1.msra.mxu0 0.0
  %463 = vmatprep.subr.mxu0 0.0
  %464 = vmatpush1.msra.mxu0 0.0
  %465 = vmatprep.subr.mxu0 0.0
  %466 = vmatpush1.msra.mxu0 0.0
  %467 = vmatprep.subr.mxu0 0.0
  %468 = vmatpush1.msra.mxu0 0.0
  %469 = vmatprep.subr.mxu0 0.0
  %470 = vmatpush1.msra.mxu0 0.0
  %471 = vmatprep.subr.mxu0 0.0
  %472 = vmatpush1.msra.mxu0 0.0
  %473 = vmatprep.subr.mxu0 0.0
  %474 = vmatpush1.msra.mxu0 0.0
  %475 = vmatprep.subr.mxu0 0.0
  %476 = vmatpush1.msra.mxu0 0.0
  %477 = vmatprep.subr.mxu0 0.0
  %478 = vmatpush1.msra.mxu0 0.0
  %479 = vmatprep.subr.mxu0 0.0
  %480 = vmatpush1.msra.mxu0 0.0
  %481 = vmatprep.subr.mxu0 0.0
  %482 = vmatpush1.msra.mxu0 0.0
  %483 = vmatprep.mubr.f32.mxu0 0.0
  %v484 = vand.u32 %v155, 4294901760
  %v485 = vsub.f32 %v155, %v484
  %486 = vmatmul.mubr.f32.gmra.mrb[0].mxu0 %v485
  %v487 = vpop.f32.mrb[0].mxu0
  %v488 = vadd.f32 %v384, %v487
  %v489 = vpop.f32.mrb[0].mxu0
  %490 = vmatprep.mubr.f32.mxu0 0.0
  %v491 = vand.u32 %v158, 4294901760
  %v492 = vsub.f32 %v158, %v491
  %493 = vmatmul.mubr.f32.gmra.mrb[0].mxu0 %v492
  %v494 = vpop.f32.mrb[0].mxu0
  %v495 = vadd.f32 %v390, %v494
  %v496 = vpop.f32.mrb[0].mxu0
  %497 = vmatprep.mubr.f32.mxu0 0.0
  %v498 = vand.u32 %v161, 4294901760
  %v499 = vsub.f32 %v161, %v498
  %500 = vmatmul.mubr.f32.gmra.mrb[0].mxu0 %v499
  %v501 = vpop.f32.mrb[0].mxu0
  %v502 = vadd.f32 %v396, %v501
  %v503 = vpop.f32.mrb[0].mxu0
  %504 = vmatprep.mubr.f32.mxu0 0.0
  %v505 = vand.u32 %v164, 4294901760
  %v506 = vsub.f32 %v164, %v505
  %507 = vmatmul.mubr.f32.gmra.mrb[0].mxu0 %v506
  %v508 = vpop.f32.mrb[0].mxu0
  %v509 = vadd.f32 %v402, %v508
  %v510 = vpop.f32.mrb[0].mxu0
  %511 = vmatprep.mubr.f32.mxu0 0.0
  %v512 = vand.u32 %v167, 4294901760
  %v513 = vsub.f32 %v167, %v512
  %514 = vmatmul.mubr.f32.gmra.mrb[0].mxu0 %v513
  %v515 = vpop.f32.mrb[0].mxu0
  %v516 = vadd.f32 %v408, %v515
  %v517 = vpop.f32.mrb[0].mxu0
  %518 = vdwg.mxu0
  %519 = vmatprep.subr.mxu0 0.0
  %520 = vmatpush1.msra.mxu0 %v50
  %521 = vmatprep.subr.mxu0 0.0
  %522 = vmatpush1.msra.mxu0 %v51
  %523 = vmatprep.subr.mxu0 0.0
  %524 = vmatpush1.msra.mxu0 %v52
  %525 = vmatprep.subr.mxu0 0.0
  %526 = vmatpush1.msra.mxu0 %v53
  %527 = vmatprep.subr.mxu0 0.0
  %528 = vmatpush1.msra.mxu0 %v54
  %529 = vmatprep.subr.mxu0 0.0
  %530 = vmatpush1.msra.mxu0 %v55
  %531 = vmatprep.subr.mxu0 0.0
  %532 = vmatpush1.msra.mxu0 %v56
  %533 = vmatprep.subr.mxu0 0.0
  %534 = vmatpush1.msra.mxu0 %v57
  %535 = vmatprep.subr.mxu0 0.0
  %536 = vmatpush1.msra.mxu0 0.0
  %537 = vmatprep.subr.mxu0 0.0
  %538 = vmatpush1.msra.mxu0 0.0
  %539 = vmatprep.subr.mxu0 0.0
  %540 = vmatpush1.msra.mxu0 0.0
  %541 = vmatprep.subr.mxu0 0.0
  %542 = vmatpush1.msra.mxu0 0.0
  %543 = vmatprep.subr.mxu0 0.0
  %544 = vmatpush1.msra.mxu0 0.0
  %545 = vmatprep.subr.mxu0 0.0
  %546 = vmatpush1.msra.mxu0 0.0
  %547 = vmatprep.subr.mxu0 0.0
  %548 = vmatpush1.msra.mxu0 0.0
  %549 = vmatprep.subr.mxu0 0.0
  %550 = vmatpush1.msra.mxu0 0.0
  %551 = vmatprep.subr.mxu0 0.0
  %552 = vmatpush1.msra.mxu0 0.0
  %553 = vmatprep.subr.mxu0 0.0
  %554 = vmatpush1.msra.mxu0 0.0
  %555 = vmatprep.subr.mxu0 0.0
  %556 = vmatpush1.msra.mxu0 0.0
  %557 = vmatprep.subr.mxu0 0.0
  %558 = vmatpush1.msra.mxu0 0.0
  %559 = vmatprep.subr.mxu0 0.0
  %560 = vmatpush1.msra.mxu0 0.0
  %561 = vmatprep.subr.mxu0 0.0
  %562 = vmatpush1.msra.mxu0 0.0
  %563 = vmatprep.subr.mxu0 0.0
  %564 = vmatpush1.msra.mxu0 0.0
  %565 = vmatprep.subr.mxu0 0.0
  %566 = vmatpush1.msra.mxu0 0.0
  %567 = vmatprep.subr.mxu0 0.0
  %568 = vmatpush1.msra.mxu0 0.0
  %569 = vmatprep.subr.mxu0 0.0
  %570 = vmatpush1.msra.mxu0 0.0
  %571 = vmatprep.subr.mxu0 0.0
  %572 = vmatpush1.msra.mxu0 0.0
  %573 = vmatprep.subr.mxu0 0.0
  %574 = vmatpush1.msra.mxu0 0.0
  %575 = vmatprep.subr.mxu0 0.0
  %576 = vmatpush1.msra.mxu0 0.0
  %577 = vmatprep.subr.mxu0 0.0
  %578 = vmatpush1.msra.mxu0 0.0
  %579 = vmatprep.subr.mxu0 0.0
  %580 = vmatpush1.msra.mxu0 0.0
  %581 = vmatprep.subr.mxu0 0.0
  %582 = vmatpush1.msra.mxu0 0.0
  %583 = vmatprep.mubr.f32.mxu0 0.0
  %v584 = vand.u32 %v155, 4294901760
  %v585 = vsub.f32 %v155, %v584
  %v586 = vand.u32 %v585, 4294901760
  %587 = vmatmul.mubr.f32.gmra.mrb[0].mxu0 %v586
  %v588 = vpop.f32.mrb[0].mxu0
  %v589 = vadd.f32 %v488, %v588
  %v590 = vpop.f32.mrb[0].mxu0
  %591 = vmatprep.mubr.f32.mxu0 0.0
  %v592 = vand.u32 %v158, 4294901760
  %v593 = vsub.f32 %v158, %v592
  %v594 = vand.u32 %v593, 4294901760
  %595 = vmatmul.mubr.f32.gmra.mrb[0].mxu0 %v594
  %v596 = vpop.f32.mrb[0].mxu0
  %v597 = vadd.f32 %v495, %v596
  %v598 = vpop.f32.mrb[0].mxu0
  %599 = vmatprep.mubr.f32.mxu0 0.0
  %v600 = vand.u32 %v161, 4294901760
  %v601 = vsub.f32 %v161, %v600
  %v602 = vand.u32 %v601, 4294901760
  %603 = vmatmul.mubr.f32.gmra.mrb[0].mxu0 %v602
  %v604 = vpop.f32.mrb[0].mxu0
  %v605 = vadd.f32 %v502, %v604
  %v606 = vpop.f32.mrb[0].mxu0
  %607 = vmatprep.mubr.f32.mxu0 0.0
  %v608 = vand.u32 %v164, 4294901760
  %v609 = vsub.f32 %v164, %v608
  %v610 = vand.u32 %v609, 4294901760
  %611 = vmatmul.mubr.f32.gmra.mrb[0].mxu0 %v610
  %v612 = vpop.f32.mrb[0].mxu0
  %v613 = vadd.f32 %v509, %v612
  %v614 = vpop.f32.mrb[0].mxu0
  %615 = vmatprep.mubr.f32.mxu0 0.0
  %v616 = vand.u32 %v167, 4294901760
  %v617 = vsub.f32 %v167, %v616
  %v618 = vand.u32 %v617, 4294901760
  %619 = vmatmul.mubr.f32.gmra.mrb[0].mxu0 %v618
  %v620 = vpop.f32.mrb[0].mxu0
  %v621 = vadd.f32 %v516, %v620
  %v622 = vpop.f32.mrb[0].mxu0
  %623 = vdwg.mxu0
  %624 = vmatprep.subr.mxu0 0.0
  %v625 = vsub.f32 %v50, %v50
  %v626 = vand.u32 %v625, 4294901760
  %627 = vmatpush1.msra.mxu0 %v626
  %628 = vmatprep.subr.mxu0 0.0
  %v629 = vsub.f32 %v51, %v51
  %v630 = vand.u32 %v629, 4294901760
  %631 = vmatpush1.msra.mxu0 %v630
  %632 = vmatprep.subr.mxu0 0.0
  %v633 = vsub.f32 %v52, %v52
  %v634 = vand.u32 %v633, 4294901760
  %635 = vmatpush1.msra.mxu0 %v634
  %636 = vmatprep.subr.mxu0 0.0
  %v637 = vsub.f32 %v53, %v53
  %v638 = vand.u32 %v637, 4294901760
  %639 = vmatpush1.msra.mxu0 %v638
  %640 = vmatprep.subr.mxu0 0.0
  %v641 = vsub.f32 %v54, %v54
  %v642 = vand.u32 %v641, 4294901760
  %643 = vmatpush1.msra.mxu0 %v642
  %644 = vmatprep.subr.mxu0 0.0
  %v645 = vsub.f32 %v55, %v55
  %v646 = vand.u32 %v645, 4294901760
  %647 = vmatpush1.msra.mxu0 %v646
  %648 = vmatprep.subr.mxu0 0.0
  %v649 = vsub.f32 %v56, %v56
  %v650 = vand.u32 %v649, 4294901760
  %651 = vmatpush1.msra.mxu0 %v650
  %652 = vmatprep.subr.mxu0 0.0
  %v653 = vsub.f32 %v57, %v57
  %v654 = vand.u32 %v653, 4294901760
  %655 = vmatpush1.msra.mxu0 %v654
  %656 = vmatprep.subr.mxu0 0.0
  %657 = vmatpush1.msra.mxu0 0.0
  %658 = vmatprep.subr.mxu0 0.0
  %659 = vmatpush1.msra.mxu0 0.0
  %660 = vmatprep.subr.mxu0 0.0
  %661 = vmatpush1.msra.mxu0 0.0
  %662 = vmatprep.subr.mxu0 0.0
  %663 = vmatpush1.msra.mxu0 0.0
  %664 = vmatprep.subr.mxu0 0.0
  %665 = vmatpush1.msra.mxu0 0.0
  %666 = vmatprep.subr.mxu0 0.0
  %667 = vmatpush1.msra.mxu0 0.0
  %668 = vmatprep.subr.mxu0 0.0
  %669 = vmatpush1.msra.mxu0 0.0
  %670 = vmatprep.subr.mxu0 0.0
  %671 = vmatpush1.msra.mxu0 0.0
  %672 = vmatprep.subr.mxu0 0.0
  %673 = vmatpush1.msra.mxu0 0.0
  %674 = vmatprep.subr.mxu0 0.0
  %675 = vmatpush1.msra.mxu0 0.0
  %676 = vmatprep.subr.mxu0 0.0
  %677 = vmatpush1.msra.mxu0 0.0
  %678 = vmatprep.subr.mxu0 0.0
  %679 = vmatpush1.msra.mxu0 0.0
  %680 = vmatprep.subr.mxu0 0.0
  %681 = vmatpush1.msra.mxu0 0.0
  %682 = vmatprep.subr.mxu0 0.0
  %683 = vmatpush1.msra.mxu0 0.0
  %684 = vmatprep.subr.mxu0 0.0
  %685 = vmatpush1.msra.mxu0 0.0
  %686 = vmatprep.subr.mxu0 0.0
  %687 = vmatpush1.msra.mxu0 0.0
  %688 = vmatprep.subr.mxu0 0.0
  %689 = vmatpush1.msra.mxu0 0.0
  %690 = vmatprep.subr.mxu0 0.0
  %691 = vmatpush1.msra.mxu0 0.0
  %692 = vmatprep.subr.mxu0 0.0
  %693 = vmatpush1.msra.mxu0 0.0
  %694 = vmatprep.subr.mxu0 0.0
  %695 = vmatpush1.msra.mxu0 0.0
  %696 = vmatprep.subr.mxu0 0.0
  %697 = vmatpush1.msra.mxu0 0.0
  %698 = vmatprep.subr.mxu0 0.0
  %699 = vmatpush1.msra.mxu0 0.0
  %700 = vmatprep.subr.mxu0 0.0
  %701 = vmatpush1.msra.mxu0 0.0
  %702 = vmatprep.subr.mxu0 0.0
  %703 = vmatpush1.msra.mxu0 0.0
  %704 = vmatprep.mubr.f32.mxu0 0.0
  %v705 = vand.u32 %v155, 4294901760
  %706 = vmatmul.mubr.f32.gmra.mrb[0].mxu0 %v705
  %v707 = vpop.f32.mrb[0].mxu0
  %v708 = vadd.f32 %v589, %v707
  %v709 = vpop.f32.mrb[0].mxu0
  %710 = vmatprep.mubr.f32.mxu0 0.0
  %v711 = vand.u32 %v158, 4294901760
  %712 = vmatmul.mubr.f32.gmra.mrb[0].mxu0 %v711
  %v713 = vpop.f32.mrb[0].mxu0
  %v714 = vadd.f32 %v597, %v713
  %v715 = vpop.f32.mrb[0].mxu0
  %716 = vmatprep.mubr.f32.mxu0 0.0
  %v717 = vand.u32 %v161, 4294901760
  %718 = vmatmul.mubr.f32.gmra.mrb[0].mxu0 %v717
  %v719 = vpop.f32.mrb[0].mxu0
  %v720 = vadd.f32 %v605, %v719
  %v721 = vpop.f32.mrb[0].mxu0
  %722 = vmatprep.mubr.f32.mxu0 0.0
  %v723 = vand.u32 %v164, 4294901760
  %724 = vmatmul.mubr.f32.gmra.mrb[0].mxu0 %v723
  %v725 = vpop.f32.mrb[0].mxu0
  %v726 = vadd.f32 %v613, %v725
  %v727 = vpop.f32.mrb[0].mxu0
  %728 = vmatprep.mubr.f32.mxu0 0.0
  %v729 = vand.u32 %v167, 4294901760
  %730 = vmatmul.mubr.f32.gmra.mrb[0].mxu0 %v729
  %v731 = vpop.f32.mrb[0].mxu0
  %v732 = vadd.f32 %v621, %v731
  %v733 = vpop.f32.mrb[0].mxu0
  %734 = vdwg.mxu0
  %735 = vmatprep.subr.mxu0 0.0
  %736 = vmatpush1.msra.mxu0 %v50
  %737 = vmatprep.subr.mxu0 0.0
  %738 = vmatpush1.msra.mxu0 %v51
  %739 = vmatprep.subr.mxu0 0.0
  %740 = vmatpush1.msra.mxu0 %v52
  %741 = vmatprep.subr.mxu0 0.0
  %742 = vmatpush1.msra.mxu0 %v53
  %743 = vmatprep.subr.mxu0 0.0
  %744 = vmatpush1.msra.mxu0 %v54
  %745 = vmatprep.subr.mxu0 0.0
  %746 = vmatpush1.msra.mxu0 %v55
  %747 = vmatprep.subr.mxu0 0.0
  %748 = vmatpush1.msra.mxu0 %v56
  %749 = vmatprep.subr.mxu0 0.0
  %750 = vmatpush1.msra.mxu0 %v57
  %751 = vmatprep.subr.mxu0 0.0
  %752 = vmatpush1.msra.mxu0 0.0
  %753 = vmatprep.subr.mxu0 0.0
  %754 = vmatpush1.msra.mxu0 0.0
  %755 = vmatprep.subr.mxu0 0.0
  %756 = vmatpush1.msra.mxu0 0.0
  %757 = vmatprep.subr.mxu0 0.0
  %758 = vmatpush1.msra.mxu0 0.0
  %759 = vmatprep.subr.mxu0 0.0
  %760 = vmatpush1.msra.mxu0 0.0
  %761 = vmatprep.subr.mxu0 0.0
  %762 = vmatpush1.msra.mxu0 0.0
  %763 = vmatprep.subr.mxu0 0.0
  %764 = vmatpush1.msra.mxu0 0.0
  %765 = vmatprep.subr.mxu0 0.0
  %766 = vmatpush1.msra.mxu0 0.0
  %767 = vmatprep.subr.mxu0 0.0
  %768 = vmatpush1.msra.mxu0 0.0
  %769 = vmatprep.subr.mxu0 0.0
  %770 = vmatpush1.msra.mxu0 0.0
  %771 = vmatprep.subr.mxu0 0.0
  %772 = vmatpush1.msra.mxu0 0.0
  %773 = vmatprep.subr.mxu0 0.0
  %774 = vmatpush1.msra.mxu0 0.0
  %775 = vmatprep.subr.mxu0 0.0
  %776 = vmatpush1.msra.mxu0 0.0
  %777 = vmatprep.subr.mxu0 0.0
  %778 = vmatpush1.msra.mxu0 0.0
  %779 = vmatprep.subr.mxu0 0.0
  %780 = vmatpush1.msra.mxu0 0.0
  %781 = vmatprep.subr.mxu0 0.0
  %782 = vmatpush1.msra.mxu0 0.0
  %783 = vmatprep.subr.mxu0 0.0
  %784 = vmatpush1.msra.mxu0 0.0
  %785 = vmatprep.subr.mxu0 0.0
  %786 = vmatpush1.msra.mxu0 0.0
  %787 = vmatprep.subr.mxu0 0.0
  %788 = vmatpush1.msra.mxu0 0.0
  %789 = vmatprep.subr.mxu0 0.0
  %790 = vmatpush1.msra.mxu0 0.0
  %791 = vmatprep.subr.mxu0 0.0
  %792 = vmatpush1.msra.mxu0 0.0
  %793 = vmatprep.subr.mxu0 0.0
  %794 = vmatpush1.msra.mxu0 0.0
  %795 = vmatprep.subr.mxu0 0.0
  %796 = vmatpush1.msra.mxu0 0.0
  %797 = vmatprep.subr.mxu0 0.0
  %798 = vmatpush1.msra.mxu0 0.0
  %799 = vmatprep.mubr.f32.mxu0 0.0
  %v800 = vand.u32 %v155, 4294901760
  %801 = vmatmul.mubr.f32.gmra.mrb[0].mxu0 %v800
  %v802 = vpop.f32.mrb[0].mxu0
  %v803 = vadd.f32 %v708, %v802
  %v804 = vpop.f32.mrb[0].mxu0
  %805 = vmatprep.mubr.f32.mxu0 0.0
  %v806 = vand.u32 %v158, 4294901760
  %807 = vmatmul.mubr.f32.gmra.mrb[0].mxu0 %v806
  %v808 = vpop.f32.mrb[0].mxu0
  %v809 = vadd.f32 %v714, %v808
  %v810 = vpop.f32.mrb[0].mxu0
  %811 = vmatprep.mubr.f32.mxu0 0.0
  %v812 = vand.u32 %v161, 4294901760
  %813 = vmatmul.mubr.f32.gmra.mrb[0].mxu0 %v812
  %v814 = vpop.f32.mrb[0].mxu0
  %v815 = vadd.f32 %v720, %v814
  %v816 = vpop.f32.mrb[0].mxu0
  %817 = vmatprep.mubr.f32.mxu0 0.0
  %v818 = vand.u32 %v164, 4294901760
  %819 = vmatmul.mubr.f32.gmra.mrb[0].mxu0 %v818
  %v820 = vpop.f32.mrb[0].mxu0
  %v821 = vadd.f32 %v726, %v820
  %v822 = vpop.f32.mrb[0].mxu0
  %823 = vmatprep.mubr.f32.mxu0 0.0
  %v824 = vand.u32 %v167, 4294901760
  %825 = vmatmul.mubr.f32.gmra.mrb[0].mxu0 %v824
  %v826 = vpop.f32.mrb[0].mxu0
  %v827 = vadd.f32 %v732, %v826
  %v828 = vpop.f32.mrb[0].mxu0
  %829 = vdwg.mxu0
  %v830 = vld [vmem:[%s1] sm:$0xff]
  %v831 = vld [vmem:[%s1 + $0x8] sm:$0xff]
  %v832 = vld [vmem:[%s1 + $0x10] sm:$0xff]
  %v833 = vld [vmem:[%s1 + $0x18] sm:$0xff]
  %v834 = vld [vmem:[%s1 + $0x20] sm:$0x1]
  %835 = vmatprep.subr.mxu0 0.0
  %v836 = vand.u32 %v132, 4294901760
  %837 = vmatpush1.msra.mxu0 %v836
  %838 = vmatprep.subr.mxu0 0.0
  %v839 = vand.u32 %v133, 4294901760
  %840 = vmatpush1.msra.mxu0 %v839
  %841 = vmatprep.subr.mxu0 0.0
  %v842 = vand.u32 %v134, 4294901760
  %843 = vmatpush1.msra.mxu0 %v842
  %844 = vmatprep.subr.mxu0 0.0
  %v845 = vand.u32 %v135, 4294901760
  %846 = vmatpush1.msra.mxu0 %v845
  %847 = vmatprep.subr.mxu0 0.0
  %v848 = vand.u32 %v136, 4294901760
  %849 = vmatpush1.msra.mxu0 %v848
  %850 = vmatprep.subr.mxu0 0.0
  %v851 = vand.u32 %v137, 4294901760
  %852 = vmatpush1.msra.mxu0 %v851
  %853 = vmatprep.subr.mxu0 0.0
  %v854 = vand.u32 %v138, 4294901760
  %855 = vmatpush1.msra.mxu0 %v854
  %856 = vmatprep.subr.mxu0 0.0
  %v857 = vand.u32 %v139, 4294901760
  %858 = vmatpush1.msra.mxu0 %v857
  %859 = vmatprep.subr.mxu0 0.0
  %v860 = vand.u32 %v140, 4294901760
  %861 = vmatpush1.msra.mxu0 %v860
  %862 = vmatprep.subr.mxu0 0.0
  %v863 = vand.u32 %v141, 4294901760
  %864 = vmatpush1.msra.mxu0 %v863
  %865 = vmatprep.subr.mxu0 0.0
  %v866 = vand.u32 %v142, 4294901760
  %867 = vmatpush1.msra.mxu0 %v866
  %868 = vmatprep.subr.mxu0 0.0
  %v869 = vand.u32 %v143, 4294901760
  %870 = vmatpush1.msra.mxu0 %v869
  %871 = vmatprep.subr.mxu0 0.0
  %v872 = vand.u32 %v144, 4294901760
  %873 = vmatpush1.msra.mxu0 %v872
  %874 = vmatprep.subr.mxu0 0.0
  %v875 = vand.u32 %v145, 4294901760
  %876 = vmatpush1.msra.mxu0 %v875
  %877 = vmatprep.subr.mxu0 0.0
  %v878 = vand.u32 %v146, 4294901760
  %879 = vmatpush1.msra.mxu0 %v878
  %880 = vmatprep.subr.mxu0 0.0
  %v881 = vand.u32 %v147, 4294901760
  %882 = vmatpush1.msra.mxu0 %v881
  %883 = vmatprep.subr.mxu0 0.0
  %884 = vmatpush1.msra.mxu0 0.0
  %885 = vmatprep.subr.mxu0 0.0
  %886 = vmatpush1.msra.mxu0 0.0
  %887 = vmatprep.subr.mxu0 0.0
  %888 = vmatpush1.msra.mxu0 0.0
  %889 = vmatprep.subr.mxu0 0.0
  %890 = vmatpush1.msra.mxu0 0.0
  %891 = vmatprep.subr.mxu0 0.0
  %892 = vmatpush1.msra.mxu0 0.0
  %893 = vmatprep.subr.mxu0 0.0
  %894 = vmatpush1.msra.mxu0 0.0
  %895 = vmatprep.subr.mxu0 0.0
  %896 = vmatpush1.msra.mxu0 0.0
  %897 = vmatprep.subr.mxu0 0.0
  %898 = vmatpush1.msra.mxu0 0.0
  %899 = vmatprep.subr.mxu0 0.0
  %900 = vmatpush1.msra.mxu0 0.0
  %901 = vmatprep.subr.mxu0 0.0
  %902 = vmatpush1.msra.mxu0 0.0
  %903 = vmatprep.subr.mxu0 0.0
  %904 = vmatpush1.msra.mxu0 0.0
  %905 = vmatprep.subr.mxu0 0.0
  %906 = vmatpush1.msra.mxu0 0.0
  %907 = vmatprep.subr.mxu0 0.0
  %908 = vmatpush1.msra.mxu0 0.0
  %909 = vmatprep.subr.mxu0 0.0
  %910 = vmatpush1.msra.mxu0 0.0
  %911 = vmatprep.subr.mxu0 0.0
  %912 = vmatpush1.msra.mxu0 0.0
  %913 = vmatprep.subr.mxu0 0.0
  %914 = vmatpush1.msra.mxu0 0.0
  %915 = vmatprep.mubr.f32.mxu0 0.0
  %v916 = vand.u32 %v830, 4294901760
  %v917 = vsub.f32 %v830, %v916
  %v918 = vand.u32 %v917, 4294901760
  %v919 = vsub.f32 %v917, %v918
  %v920 = vand.u32 %v919, 4294901760
  %921 = vmatmul.mubr.f32.gmra.mrb[0].mxu0 %v920
  %v922 = vpop.f32.mrb[0].mxu0
  %v923 = vadd.f32 0.0, %v922
  %v924 = vpop.f32.mrb[0].mxu0
  %925 = vmatprep.mubr.f32.mxu0 0.0
  %v926 = vand.u32 %v831, 4294901760
  %v927 = vsub.f32 %v831, %v926
  %v928 = vand.u32 %v927, 4294901760
  %v929 = vsub.f32 %v927, %v928
  %v930 = vand.u32 %v929, 4294901760
  %931 = vmatmul.mubr.f32.gmra.mrb[0].mxu0 %v930
  %v932 = vpop.f32.mrb[0].mxu0
  %v933 = vadd.f32 0.0, %v932
  %v934 = vpop.f32.mrb[0].mxu0
  %935 = vmatprep.mubr.f32.mxu0 0.0
  %v936 = vand.u32 %v832, 4294901760
  %v937 = vsub.f32 %v832, %v936
  %v938 = vand.u32 %v937, 4294901760
  %v939 = vsub.f32 %v937, %v938
  %v940 = vand.u32 %v939, 4294901760
  %941 = vmatmul.mubr.f32.gmra.mrb[0].mxu0 %v940
  %v942 = vpop.f32.mrb[0].mxu0
  %v943 = vadd.f32 0.0, %v942
  %v944 = vpop.f32.mrb[0].mxu0
  %945 = vmatprep.mubr.f32.mxu0 0.0
  %v946 = vand.u32 %v833, 4294901760
  %v947 = vsub.f32 %v833, %v946
  %v948 = vand.u32 %v947, 4294901760
  %v949 = vsub.f32 %v947, %v948
  %v950 = vand.u32 %v949, 4294901760
  %951 = vmatmul.mubr.f32.gmra.mrb[0].mxu0 %v950
  %v952 = vpop.f32.mrb[0].mxu0
  %v953 = vadd.f32 0.0, %v952
  %v954 = vpop.f32.mrb[0].mxu0
  %955 = vmatprep.mubr.f32.mxu0 0.0
  %v956 = vand.u32 %v834, 4294901760
  %v957 = vsub.f32 %v834, %v956
  %v958 = vand.u32 %v957, 4294901760
  %v959 = vsub.f32 %v957, %v958
  %v960 = vand.u32 %v959, 4294901760
  %961 = vmatmul.mubr.f32.gmra.mrb[0].mxu0 %v960
  %v962 = vpop.f32.mrb[0].mxu0
  %v963 = vadd.f32 0.0, %v962
  %v964 = vpop.f32.mrb[0].mxu0
  %965 = vdwg.mxu0
  %966 = vmatprep.subr.mxu0 0.0
  %v967 = vand.u32 %v132, 4294901760
  %v968 = vsub.f32 %v132, %v967
  %v969 = vand.u32 %v968, 4294901760
  %v970 = vsub.f32 %v968, %v969
  %v971 = vand.u32 %v970, 4294901760
  %972 = vmatpush1.msra.mxu0 %v971
  %973 = vmatprep.subr.mxu0 0.0
  %v974 = vand.u32 %v133, 4294901760
  %v975 = vsub.f32 %v133, %v974
  %v976 = vand.u32 %v975, 4294901760
  %v977 = vsub.f32 %v975, %v976
  %v978 = vand.u32 %v977, 4294901760
  %979 = vmatpush1.msra.mxu0 %v978
  %980 = vmatprep.subr.mxu0 0.0
  %v981 = vand.u32 %v134, 4294901760
  %v982 = vsub.f32 %v134, %v981
  %v983 = vand.u32 %v982, 4294901760
  %v984 = vsub.f32 %v982, %v983
  %v985 = vand.u32 %v984, 4294901760
  %986 = vmatpush1.msra.mxu0 %v985
  %987 = vmatprep.subr.mxu0 0.0
  %v988 = vand.u32 %v135, 4294901760
  %v989 = vsub.f32 %v135, %v988
  %v990 = vand.u32 %v989, 4294901760
  %v991 = vsub.f32 %v989, %v990
  %v992 = vand.u32 %v991, 4294901760
  %993 = vmatpush1.msra.mxu0 %v992
  %994 = vmatprep.subr.mxu0 0.0
  %v995 = vand.u32 %v136, 4294901760
  %v996 = vsub.f32 %v136, %v995
  %v997 = vand.u32 %v996, 4294901760
  %v998 = vsub.f32 %v996, %v997
  %v999 = vand.u32 %v998, 4294901760
  %1000 = vmatpush1.msra.mxu0 %v999
  %1001 = vmatprep.subr.mxu0 0.0
  %v1002 = vand.u32 %v137, 4294901760
  %v1003 = vsub.f32 %v137, %v1002
  %v1004 = vand.u32 %v1003, 4294901760
  %v1005 = vsub.f32 %v1003, %v1004
  %v1006 = vand.u32 %v1005, 4294901760
  %1007 = vmatpush1.msra.mxu0 %v1006
  %1008 = vmatprep.subr.mxu0 0.0
  %v1009 = vand.u32 %v138, 4294901760
  %v1010 = vsub.f32 %v138, %v1009
  %v1011 = vand.u32 %v1010, 4294901760
  %v1012 = vsub.f32 %v1010, %v1011
  %v1013 = vand.u32 %v1012, 4294901760
  %1014 = vmatpush1.msra.mxu0 %v1013
  %1015 = vmatprep.subr.mxu0 0.0
  %v1016 = vand.u32 %v139, 4294901760
  %v1017 = vsub.f32 %v139, %v1016
  %v1018 = vand.u32 %v1017, 4294901760
  %v1019 = vsub.f32 %v1017, %v1018
  %v1020 = vand.u32 %v1019, 4294901760
  %1021 = vmatpush1.msra.mxu0 %v1020
  %1022 = vmatprep.subr.mxu0 0.0
  %v1023 = vand.u32 %v140, 4294901760
  %v1024 = vsub.f32 %v140, %v1023
  %v1025 = vand.u32 %v1024, 4294901760
  %v1026 = vsub.f32 %v1024, %v1025
  %v1027 = vand.u32 %v1026, 4294901760
  %1028 = vmatpush1.msra.mxu0 %v1027
  %1029 = vmatprep.subr.mxu0 0.0
  %v1030 = vand.u32 %v141, 4294901760
  %v1031 = vsub.f32 %v141, %v1030
  %v1032 = vand.u32 %v1031, 4294901760
  %v1033 = vsub.f32 %v1031, %v1032
  %v1034 = vand.u32 %v1033, 4294901760
  %1035 = vmatpush1.msra.mxu0 %v1034
  %1036 = vmatprep.subr.mxu0 0.0
  %v1037 = vand.u32 %v142, 4294901760
  %v1038 = vsub.f32 %v142, %v1037
  %v1039 = vand.u32 %v1038, 4294901760
  %v1040 = vsub.f32 %v1038, %v1039
  %v1041 = vand.u32 %v1040, 4294901760
  %1042 = vmatpush1.msra.mxu0 %v1041
  %1043 = vmatprep.subr.mxu0 0.0
  %v1044 = vand.u32 %v143, 4294901760
  %v1045 = vsub.f32 %v143, %v1044
  %v1046 = vand.u32 %v1045, 4294901760
  %v1047 = vsub.f32 %v1045, %v1046
  %v1048 = vand.u32 %v1047, 4294901760
  %1049 = vmatpush1.msra.mxu0 %v1048
  %1050 = vmatprep.subr.mxu0 0.0
  %v1051 = vand.u32 %v144, 4294901760
  %v1052 = vsub.f32 %v144, %v1051
  %v1053 = vand.u32 %v1052, 4294901760
  %v1054 = vsub.f32 %v1052, %v1053
  %v1055 = vand.u32 %v1054, 4294901760
  %1056 = vmatpush1.msra.mxu0 %v1055
  %1057 = vmatprep.subr.mxu0 0.0
  %v1058 = vand.u32 %v145, 4294901760
  %v1059 = vsub.f32 %v145, %v1058
  %v1060 = vand.u32 %v1059, 4294901760
  %v1061 = vsub.f32 %v1059, %v1060
  %v1062 = vand.u32 %v1061, 4294901760
  %1063 = vmatpush1.msra.mxu0 %v1062
  %1064 = vmatprep.subr.mxu0 0.0
  %v1065 = vand.u32 %v146, 4294901760
  %v1066 = vsub.f32 %v146, %v1065
  %v1067 = vand.u32 %v1066, 4294901760
  %v1068 = vsub.f32 %v1066, %v1067
  %v1069 = vand.u32 %v1068, 4294901760
  %1070 = vmatpush1.msra.mxu0 %v1069
  %1071 = vmatprep.subr.mxu0 0.0
  %v1072 = vand.u32 %v147, 4294901760
  %v1073 = vsub.f32 %v147, %v1072
  %v1074 = vand.u32 %v1073, 4294901760
  %v1075 = vsub.f32 %v1073, %v1074
  %v1076 = vand.u32 %v1075, 4294901760
  %1077 = vmatpush1.msra.mxu0 %v1076
  %1078 = vmatprep.subr.mxu0 0.0
  %1079 = vmatpush1.msra.mxu0 0.0
  %1080 = vmatprep.subr.mxu0 0.0
  %1081 = vmatpush1.msra.mxu0 0.0
  %1082 = vmatprep.subr.mxu0 0.0
  %1083 = vmatpush1.msra.mxu0 0.0
  %1084 = vmatprep.subr.mxu0 0.0
  %1085 = vmatpush1.msra.mxu0 0.0
  %1086 = vmatprep.subr.mxu0 0.0
  %1087 = vmatpush1.msra.mxu0 0.0
  %1088 = vmatprep.subr.mxu0 0.0
  %1089 = vmatpush1.msra.mxu0 0.0
  %1090 = vmatprep.subr.mxu0 0.0
  %1091 = vmatpush1.msra.mxu0 0.0
  %1092 = vmatprep.subr.mxu0 0.0
  %1093 = vmatpush1.msra.mxu0 0.0
  %1094 = vmatprep.subr.mxu0 0.0
  %1095 = vmatpush1.msra.mxu0 0.0
  %1096 = vmatprep.subr.mxu0 0.0
  %1097 = vmatpush1.msra.mxu0 0.0
  %1098 = vmatprep.subr.mxu0 0.0
  %1099 = vmatpush1.msra.mxu0 0.0
  %1100 = vmatprep.subr.mxu0 0.0
  %1101 = vmatpush1.msra.mxu0 0.0
  %1102 = vmatprep.subr.mxu0 0.0
  %1103 = vmatpush1.msra.mxu0 0.0
  %1104 = vmatprep.subr.mxu0 0.0
  %1105 = vmatpush1.msra.mxu0 0.0
  %1106 = vmatprep.subr.mxu0 0.0
  %1107 = vmatpush1.msra.mxu0 0.0
  %1108 = vmatprep.subr.mxu0 0.0
  %1109 = vmatpush1.msra.mxu0 0.0
  %1110 = vmatprep.mubr.f32.mxu0 0.0
  %v1111 = vand.u32 %v830, 4294901760
  %1112 = vmatmul.mubr.f32.gmra.mrb[0].mxu0 %v1111
  %v1113 = vpop.f32.mrb[0].mxu0
  %v1114 = vadd.f32 %v923, %v1113
  %v1115 = vpop.f32.mrb[0].mxu0
  %1116 = vmatprep.mubr.f32.mxu0 0.0
  %v1117 = vand.u32 %v831, 4294901760
  %1118 = vmatmul.mubr.f32.gmra.mrb[0].mxu0 %v1117
  %v1119 = vpop.f32.mrb[0].mxu0
  %v1120 = vadd.f32 %v933, %v1119
  %v1121 = vpop.f32.mrb[0].mxu0
  %1122 = vmatprep.mubr.f32.mxu0 0.0
  %v1123 = vand.u32 %v832, 4294901760
  %1124 = vmatmul.mubr.f32.gmra.mrb[0].mxu0 %v1123
  %v1125 = vpop.f32.mrb[0].mxu0
  %v1126 = vadd.f32 %v943, %v1125
  %v1127 = vpop.f32.mrb[0].mxu0
  %1128 = vmatprep.mubr.f32.mxu0 0.0
  %v1129 = vand.u32 %v833, 4294901760
  %1130 = vmatmul.mubr.f32.gmra.mrb[0].mxu0 %v1129
  %v1131 = vpop.f32.mrb[0].mxu0
  %v1132 = vadd.f32 %v953, %v1131
  %v1133 = vpop.f32.mrb[0].mxu0
  %1134 = vmatprep.mubr.f32.mxu0 0.0
  %v1135 = vand.u32 %v834, 4294901760
  %1136 = vmatmul.mubr.f32.gmra.mrb[0].mxu0 %v1135
  %v1137 = vpop.f32.mrb[0].mxu0
  %v1138 = vadd.f32 %v963, %v1137
  %v1139 = vpop.f32.mrb[0].mxu0
  %1140 = vdwg.mxu0
  %1141 = vmatprep.subr.mxu0 0.0
  %v1142 = vand.u32 %v132, 4294901760
  %v1143 = vsub.f32 %v132, %v1142
  %1144 = vmatpush1.msra.mxu0 %v1143
  %1145 = vmatprep.subr.mxu0 0.0
  %v1146 = vand.u32 %v133, 4294901760
  %v1147 = vsub.f32 %v133, %v1146
  %1148 = vmatpush1.msra.mxu0 %v1147
  %1149 = vmatprep.subr.mxu0 0.0
  %v1150 = vand.u32 %v134, 4294901760
  %v1151 = vsub.f32 %v134, %v1150
  %1152 = vmatpush1.msra.mxu0 %v1151
  %1153 = vmatprep.subr.mxu0 0.0
  %v1154 = vand.u32 %v135, 4294901760
  %v1155 = vsub.f32 %v135, %v1154
  %1156 = vmatpush1.msra.mxu0 %v1155
  %1157 = vmatprep.subr.mxu0 0.0
  %v1158 = vand.u32 %v136, 4294901760
  %v1159 = vsub.f32 %v136, %v1158
  %1160 = vmatpush1.msra.mxu0 %v1159
  %1161 = vmatprep.subr.mxu0 0.0
  %v1162 = vand.u32 %v137, 4294901760
  %v1163 = vsub.f32 %v137, %v1162
  %1164 = vmatpush1.msra.mxu0 %v1163
  %1165 = vmatprep.subr.mxu0 0.0
  %v1166 = vand.u32 %v138, 4294901760
  %v1167 = vsub.f32 %v138, %v1166
  %1168 = vmatpush1.msra.mxu0 %v1167
  %1169 = vmatprep.subr.mxu0 0.0
  %v1170 = vand.u32 %v139, 4294901760
  %v1171 = vsub.f32 %v139, %v1170
  %1172 = vmatpush1.msra.mxu0 %v1171
  %1173 = vmatprep.subr.mxu0 0.0
  %v1174 = vand.u32 %v140, 4294901760
  %v1175 = vsub.f32 %v140, %v1174
  %1176 = vmatpush1.msra.mxu0 %v1175
  %1177 = vmatprep.subr.mxu0 0.0
  %v1178 = vand.u32 %v141, 4294901760
  %v1179 = vsub.f32 %v141, %v1178
  %1180 = vmatpush1.msra.mxu0 %v1179
  %1181 = vmatprep.subr.mxu0 0.0
  %v1182 = vand.u32 %v142, 4294901760
  %v1183 = vsub.f32 %v142, %v1182
  %1184 = vmatpush1.msra.mxu0 %v1183
  %1185 = vmatprep.subr.mxu0 0.0
  %v1186 = vand.u32 %v143, 4294901760
  %v1187 = vsub.f32 %v143, %v1186
  %1188 = vmatpush1.msra.mxu0 %v1187
  %1189 = vmatprep.subr.mxu0 0.0
  %v1190 = vand.u32 %v144, 4294901760
  %v1191 = vsub.f32 %v144, %v1190
  %1192 = vmatpush1.msra.mxu0 %v1191
  %1193 = vmatprep.subr.mxu0 0.0
  %v1194 = vand.u32 %v145, 4294901760
  %v1195 = vsub.f32 %v145, %v1194
  %1196 = vmatpush1.msra.mxu0 %v1195
  %1197 = vmatprep.subr.mxu0 0.0
  %v1198 = vand.u32 %v146, 4294901760
  %v1199 = vsub.f32 %v146, %v1198
  %1200 = vmatpush1.msra.mxu0 %v1199
  %1201 = vmatprep.subr.mxu0 0.0
  %v1202 = vand.u32 %v147, 4294901760
  %v1203 = vsub.f32 %v147, %v1202
  %1204 = vmatpush1.msra.mxu0 %v1203
  %1205 = vmatprep.subr.mxu0 0.0
  %1206 = vmatpush1.msra.mxu0 0.0
  %1207 = vmatprep.subr.mxu0 0.0
  %1208 = vmatpush1.msra.mxu0 0.0
  %1209 = vmatprep.subr.mxu0 0.0
  %1210 = vmatpush1.msra.mxu0 0.0
  %1211 = vmatprep.subr.mxu0 0.0
  %1212 = vmatpush1.msra.mxu0 0.0
  %1213 = vmatprep.subr.mxu0 0.0
  %1214 = vmatpush1.msra.mxu0 0.0
  %1215 = vmatprep.subr.mxu0 0.0
  %1216 = vmatpush1.msra.mxu0 0.0
  %1217 = vmatprep.subr.mxu0 0.0
  %1218 = vmatpush1.msra.mxu0 0.0
  %1219 = vmatprep.subr.mxu0 0.0
  %1220 = vmatpush1.msra.mxu0 0.0
  %1221 = vmatprep.subr.mxu0 0.0
  %1222 = vmatpush1.msra.mxu0 0.0
  %1223 = vmatprep.subr.mxu0 0.0
  %1224 = vmatpush1.msra.mxu0 0.0
  %1225 = vmatprep.subr.mxu0 0.0
  %1226 = vmatpush1.msra.mxu0 0.0
  %1227 = vmatprep.subr.mxu0 0.0
  %1228 = vmatpush1.msra.mxu0 0.0
  %1229 = vmatprep.subr.mxu0 0.0
  %1230 = vmatpush1.msra.mxu0 0.0
  %1231 = vmatprep.subr.mxu0 0.0
  %1232 = vmatpush1.msra.mxu0 0.0
  %1233 = vmatprep.subr.mxu0 0.0
  %1234 = vmatpush1.msra.mxu0 0.0
  %1235 = vmatprep.subr.mxu0 0.0
  %1236 = vmatpush1.msra.mxu0 0.0
  %1237 = vmatprep.mubr.f32.mxu0 0.0
  %v1238 = vand.u32 %v830, 4294901760
  %v1239 = vsub.f32 %v830, %v1238
  %1240 = vmatmul.mubr.f32.gmra.mrb[0].mxu0 %v1239
  %v1241 = vpop.f32.mrb[0].mxu0
  %v1242 = vadd.f32 %v1114, %v1241
  %v1243 = vpop.f32.mrb[0].mxu0
  %1244 = vmatprep.mubr.f32.mxu0 0.0
  %v1245 = vand.u32 %v831, 4294901760
  %v1246 = vsub.f32 %v831, %v1245
  %1247 = vmatmul.mubr.f32.gmra.mrb[0].mxu0 %v1246
  %v1248 = vpop.f32.mrb[0].mxu0
  %v1249 = vadd.f32 %v1120, %v1248
  %v1250 = vpop.f32.mrb[0].mxu0
  %1251 = vmatprep.mubr.f32.mxu0 0.0
  %v1252 = vand.u32 %v832, 4294901760
  %v1253 = vsub.f32 %v832, %v1252
  %1254 = vmatmul.mubr.f32.gmra.mrb[0].mxu0 %v1253
  %v1255 = vpop.f32.mrb[0].mxu0
  %v1256 = vadd.f32 %v1126, %v1255
  %v1257 = vpop.f32.mrb[0].mxu0
  %1258 = vmatprep.mubr.f32.mxu0 0.0
  %v1259 = vand.u32 %v833, 4294901760
  %v1260 = vsub.f32 %v833, %v1259
  %1261 = vmatmul.mubr.f32.gmra.mrb[0].mxu0 %v1260
  %v1262 = vpop.f32.mrb[0].mxu0
  %v1263 = vadd.f32 %v1132, %v1262
  %v1264 = vpop.f32.mrb[0].mxu0
  %1265 = vmatprep.mubr.f32.mxu0 0.0
  %v1266 = vand.u32 %v834, 4294901760
  %v1267 = vsub.f32 %v834, %v1266
  %1268 = vmatmul.mubr.f32.gmra.mrb[0].mxu0 %v1267
  %v1269 = vpop.f32.mrb[0].mxu0
  %v1270 = vadd.f32 %v1138, %v1269
  %v1271 = vpop.f32.mrb[0].mxu0
  %1272 = vdwg.mxu0
  %1273 = vmatprep.subr.mxu0 0.0
  %v1274 = vand.u32 %v132, 4294901760
  %1275 = vmatpush1.msra.mxu0 %v1274
  %1276 = vmatprep.subr.mxu0 0.0
  %v1277 = vand.u32 %v133, 4294901760
  %1278 = vmatpush1.msra.mxu0 %v1277
  %1279 = vmatprep.subr.mxu0 0.0
  %v1280 = vand.u32 %v134, 4294901760
  %1281 = vmatpush1.msra.mxu0 %v1280
  %1282 = vmatprep.subr.mxu0 0.0
  %v1283 = vand.u32 %v135, 4294901760
  %1284 = vmatpush1.msra.mxu0 %v1283
  %1285 = vmatprep.subr.mxu0 0.0
  %v1286 = vand.u32 %v136, 4294901760
  %1287 = vmatpush1.msra.mxu0 %v1286
  %1288 = vmatprep.subr.mxu0 0.0
  %v1289 = vand.u32 %v137, 4294901760
  %1290 = vmatpush1.msra.mxu0 %v1289
  %1291 = vmatprep.subr.mxu0 0.0
  %v1292 = vand.u32 %v138, 4294901760
  %1293 = vmatpush1.msra.mxu0 %v1292
  %1294 = vmatprep.subr.mxu0 0.0
  %v1295 = vand.u32 %v139, 4294901760
  %1296 = vmatpush1.msra.mxu0 %v1295
  %1297 = vmatprep.subr.mxu0 0.0
  %v1298 = vand.u32 %v140, 4294901760
  %1299 = vmatpush1.msra.mxu0 %v1298
  %1300 = vmatprep.subr.mxu0 0.0
  %v1301 = vand.u32 %v141, 4294901760
  %1302 = vmatpush1.msra.mxu0 %v1301
  %1303 = vmatprep.subr.mxu0 0.0
  %v1304 = vand.u32 %v142, 4294901760
  %1305 = vmatpush1.msra.mxu0 %v1304
  %1306 = vmatprep.subr.mxu0 0.0
  %v1307 = vand.u32 %v143, 4294901760
  %1308 = vmatpush1.msra.mxu0 %v1307
  %1309 = vmatprep.subr.mxu0 0.0
  %v1310 = vand.u32 %v144, 4294901760
  %1311 = vmatpush1.msra.mxu0 %v1310
  %1312 = vmatprep.subr.mxu0 0.0
  %v1313 = vand.u32 %v145, 4294901760
  %1314 = vmatpush1.msra.mxu0 %v1313
  %1315 = vmatprep.subr.mxu0 0.0
  %v1316 = vand.u32 %v146, 4294901760
  %1317 = vmatpush1.msra.mxu0 %v1316
  %1318 = vmatprep.subr.mxu0 0.0
  %v1319 = vand.u32 %v147, 4294901760
  %1320 = vmatpush1.msra.mxu0 %v1319
  %1321 = vmatprep.subr.mxu0 0.0
  %1322 = vmatpush1.msra.mxu0 0.0
  %1323 = vmatprep.subr.mxu0 0.0
  %1324 = vmatpush1.msra.mxu0 0.0
  %1325 = vmatprep.subr.mxu0 0.0
  %1326 = vmatpush1.msra.mxu0 0.0
  %1327 = vmatprep.subr.mxu0 0.0
  %1328 = vmatpush1.msra.mxu0 0.0
  %1329 = vmatprep.subr.mxu0 0.0
  %1330 = vmatpush1.msra.mxu0 0.0
  %1331 = vmatprep.subr.mxu0 0.0
  %1332 = vmatpush1.msra.mxu0 0.0
  %1333 = vmatprep.subr.mxu0 0.0
  %1334 = vmatpush1.msra.mxu0 0.0
  %1335 = vmatprep.subr.mxu0 0.0
  %1336 = vmatpush1.msra.mxu0 0.0
  %1337 = vmatprep.subr.mxu0 0.0
  %1338 = vmatpush1.msra.mxu0 0.0
  %1339 = vmatprep.subr.mxu0 0.0
  %1340 = vmatpush1.msra.mxu0 0.0
  %1341 = vmatprep.subr.mxu0 0.0
  %1342 = vmatpush1.msra.mxu0 0.0
  %1343 = vmatprep.subr.mxu0 0.0
  %1344 = vmatpush1.msra.mxu0 0.0
  %1345 = vmatprep.subr.mxu0 0.0
  %1346 = vmatpush1.msra.mxu0 0.0
  %1347 = vmatprep.subr.mxu0 0.0
  %1348 = vmatpush1.msra.mxu0 0.0
  %1349 = vmatprep.subr.mxu0 0.0
  %1350 = vmatpush1.msra.mxu0 0.0
  %1351 = vmatprep.subr.mxu0 0.0
  %1352 = vmatpush1.msra.mxu0 0.0
  %1353 = vmatprep.mubr.f32.mxu0 0.0
  %v1354 = vand.u32 %v830, 4294901760
  %v1355 = vsub.f32 %v830, %v1354
  %v1356 = vand.u32 %v1355, 4294901760
  %1357 = vmatmul.mubr.f32.gmra.mrb[0].mxu0 %v1356
  %v1358 = vpop.f32.mrb[0].mxu0
  %v1359 = vadd.f32 %v1242, %v1358
  %v1360 = vpop.f32.mrb[0].mxu0
  %1361 = vmatprep.mubr.f32.mxu0 0.0
  %v1362 = vand.u32 %v831, 4294901760
  %v1363 = vsub.f32 %v831, %v1362
  %v1364 = vand.u32 %v1363, 4294901760
  %1365 = vmatmul.mubr.f32.gmra.mrb[0].mxu0 %v1364
  %v1366 = vpop.f32.mrb[0].mxu0
  %v1367 = vadd.f32 %v1249, %v1366
  %v1368 = vpop.f32.mrb[0].mxu0
  %1369 = vmatprep.mubr.f32.mxu0 0.0
  %v1370 = vand.u32 %v832, 4294901760
  %v1371 = vsub.f32 %v832, %v1370
  %v1372 = vand.u32 %v1371, 4294901760
  %1373 = vmatmul.mubr.f32.gmra.mrb[0].mxu0 %v1372
  %v1374 = vpop.f32.mrb[0].mxu0
  %v1375 = vadd.f32 %v1256, %v1374
  %v1376 = vpop.f32.mrb[0].mxu0
  %1377 = vmatprep.mubr.f32.mxu0 0.0
  %v1378 = vand.u32 %v833, 4294901760
  %v1379 = vsub.f32 %v833, %v1378
  %v1380 = vand.u32 %v1379, 4294901760
  %1381 = vmatmul.mubr.f32.gmra.mrb[0].mxu0 %v1380
  %v1382 = vpop.f32.mrb[0].mxu0
  %v1383 = vadd.f32 %v1263, %v1382
  %v1384 = vpop.f32.mrb[0].mxu0
  %1385 = vmatprep.mubr.f32.mxu0 0.0
  %v1386 = vand.u32 %v834, 4294901760
  %v1387 = vsub.f32 %v834, %v1386
  %v1388 = vand.u32 %v1387, 4294901760
  %1389 = vmatmul.mubr.f32.gmra.mrb[0].mxu0 %v1388
  %v1390 = vpop.f32.mrb[0].mxu0
  %v1391 = vadd.f32 %v1270, %v1390
  %v1392 = vpop.f32.mrb[0].mxu0
  %1393 = vdwg.mxu0
  %1394 = vmatprep.subr.mxu0 0.0
  %v1395 = vand.u32 %v132, 4294901760
  %v1396 = vsub.f32 %v132, %v1395
  %v1397 = vand.u32 %v1396, 4294901760
  %1398 = vmatpush1.msra.mxu0 %v1397
  %1399 = vmatprep.subr.mxu0 0.0
  %v1400 = vand.u32 %v133, 4294901760
  %v1401 = vsub.f32 %v133, %v1400
  %v1402 = vand.u32 %v1401, 4294901760
  %1403 = vmatpush1.msra.mxu0 %v1402
  %1404 = vmatprep.subr.mxu0 0.0
  %v1405 = vand.u32 %v134, 4294901760
  %v1406 = vsub.f32 %v134, %v1405
  %v1407 = vand.u32 %v1406, 4294901760
  %1408 = vmatpush1.msra.mxu0 %v1407
  %1409 = vmatprep.subr.mxu0 0.0
  %v1410 = vand.u32 %v135, 4294901760
  %v1411 = vsub.f32 %v135, %v1410
  %v1412 = vand.u32 %v1411, 4294901760
  %1413 = vmatpush1.msra.mxu0 %v1412
  %1414 = vmatprep.subr.mxu0 0.0
  %v1415 = vand.u32 %v136, 4294901760
  %v1416 = vsub.f32 %v136, %v1415
  %v1417 = vand.u32 %v1416, 4294901760
  %1418 = vmatpush1.msra.mxu0 %v1417
  %1419 = vmatprep.subr.mxu0 0.0
  %v1420 = vand.u32 %v137, 4294901760
  %v1421 = vsub.f32 %v137, %v1420
  %v1422 = vand.u32 %v1421, 4294901760
  %1423 = vmatpush1.msra.mxu0 %v1422
  %1424 = vmatprep.subr.mxu0 0.0
  %v1425 = vand.u32 %v138, 4294901760
  %v1426 = vsub.f32 %v138, %v1425
  %v1427 = vand.u32 %v1426, 4294901760
  %1428 = vmatpush1.msra.mxu0 %v1427
  %1429 = vmatprep.subr.mxu0 0.0
  %v1430 = vand.u32 %v139, 4294901760
  %v1431 = vsub.f32 %v139, %v1430
  %v1432 = vand.u32 %v1431, 4294901760
  %1433 = vmatpush1.msra.mxu0 %v1432
  %1434 = vmatprep.subr.mxu0 0.0
  %v1435 = vand.u32 %v140, 4294901760
  %v1436 = vsub.f32 %v140, %v1435
  %v1437 = vand.u32 %v1436, 4294901760
  %1438 = vmatpush1.msra.mxu0 %v1437
  %1439 = vmatprep.subr.mxu0 0.0
  %v1440 = vand.u32 %v141, 4294901760
  %v1441 = vsub.f32 %v141, %v1440
  %v1442 = vand.u32 %v1441, 4294901760
  %1443 = vmatpush1.msra.mxu0 %v1442
  %1444 = vmatprep.subr.mxu0 0.0
  %v1445 = vand.u32 %v142, 4294901760
  %v1446 = vsub.f32 %v142, %v1445
  %v1447 = vand.u32 %v1446, 4294901760
  %1448 = vmatpush1.msra.mxu0 %v1447
  %1449 = vmatprep.subr.mxu0 0.0
  %v1450 = vand.u32 %v143, 4294901760
  %v1451 = vsub.f32 %v143, %v1450
  %v1452 = vand.u32 %v1451, 4294901760
  %1453 = vmatpush1.msra.mxu0 %v1452
  %1454 = vmatprep.subr.mxu0 0.0
  %v1455 = vand.u32 %v144, 4294901760
  %v1456 = vsub.f32 %v144, %v1455
  %v1457 = vand.u32 %v1456, 4294901760
  %1458 = vmatpush1.msra.mxu0 %v1457
  %1459 = vmatprep.subr.mxu0 0.0
  %v1460 = vand.u32 %v145, 4294901760
  %v1461 = vsub.f32 %v145, %v1460
  %v1462 = vand.u32 %v1461, 4294901760
  %1463 = vmatpush1.msra.mxu0 %v1462
  %1464 = vmatprep.subr.mxu0 0.0
  %v1465 = vand.u32 %v146, 4294901760
  %v1466 = vsub.f32 %v146, %v1465
  %v1467 = vand.u32 %v1466, 4294901760
  %1468 = vmatpush1.msra.mxu0 %v1467
  %1469 = vmatprep.subr.mxu0 0.0
  %v1470 = vand.u32 %v147, 4294901760
  %v1471 = vsub.f32 %v147, %v1470
  %v1472 = vand.u32 %v1471, 4294901760
  %1473 = vmatpush1.msra.mxu0 %v1472
  %1474 = vmatprep.subr.mxu0 0.0
  %1475 = vmatpush1.msra.mxu0 0.0
  %1476 = vmatprep.subr.mxu0 0.0
  %1477 = vmatpush1.msra.mxu0 0.0
  %1478 = vmatprep.subr.mxu0 0.0
  %1479 = vmatpush1.msra.mxu0 0.0
  %1480 = vmatprep.subr.mxu0 0.0
  %1481 = vmatpush1.msra.mxu0 0.0
  %1482 = vmatprep.subr.mxu0 0.0
  %1483 = vmatpush1.msra.mxu0 0.0
  %1484 = vmatprep.subr.mxu0 0.0
  %1485 = vmatpush1.msra.mxu0 0.0
  %1486 = vmatprep.subr.mxu0 0.0
  %1487 = vmatpush1.msra.mxu0 0.0
  %1488 = vmatprep.subr.mxu0 0.0
  %1489 = vmatpush1.msra.mxu0 0.0
  %1490 = vmatprep.subr.mxu0 0.0
  %1491 = vmatpush1.msra.mxu0 0.0
  %1492 = vmatprep.subr.mxu0 0.0
  %1493 = vmatpush1.msra.mxu0 0.0
  %1494 = vmatprep.subr.mxu0 0.0
  %1495 = vmatpush1.msra.mxu0 0.0
  %1496 = vmatprep.subr.mxu0 0.0
  %1497 = vmatpush1.msra.mxu0 0.0
  %1498 = vmatprep.subr.mxu0 0.0
  %1499 = vmatpush1.msra.mxu0 0.0
  %1500 = vmatprep.subr.mxu0 0.0
  %1501 = vmatpush1.msra.mxu0 0.0
  %1502 = vmatprep.subr.mxu0 0.0
  %1503 = vmatpush1.msra.mxu0 0.0
  %1504 = vmatprep.subr.mxu0 0.0
  %1505 = vmatpush1.msra.mxu0 0.0
  %1506 = vmatprep.mubr.f32.mxu0 0.0
  %v1507 = vand.u32 %v830, 4294901760
  %1508 = vmatmul.mubr.f32.gmra.mrb[0].mxu0 %v1507
  %v1509 = vpop.f32.mrb[0].mxu0
  %v1510 = vadd.f32 %v1359, %v1509
  %v1511 = vpop.f32.mrb[0].mxu0
  %1512 = vmatprep.mubr.f32.mxu0 0.0
  %v1513 = vand.u32 %v831, 4294901760
  %1514 = vmatmul.mubr.f32.gmra.mrb[0].mxu0 %v1513
  %v1515 = vpop.f32.mrb[0].mxu0
  %v1516 = vadd.f32 %v1367, %v1515
  %v1517 = vpop.f32.mrb[0].mxu0
  %1518 = vmatprep.mubr.f32.mxu0 0.0
  %v1519 = vand.u32 %v832, 4294901760
  %1520 = vmatmul.mubr.f32.gmra.mrb[0].mxu0 %v1519
  %v1521 = vpop.f32.mrb[0].mxu0
  %v1522 = vadd.f32 %v1375, %v1521
  %v1523 = vpop.f32.mrb[0].mxu0
  %1524 = vmatprep.mubr.f32.mxu0 0.0
  %v1525 = vand.u32 %v833, 4294901760
  %1526 = vmatmul.mubr.f32.gmra.mrb[0].mxu0 %v1525
  %v1527 = vpop.f32.mrb[0].mxu0
  %v1528 = vadd.f32 %v1383, %v1527
  %v1529 = vpop.f32.mrb[0].mxu0
  %1530 = vmatprep.mubr.f32.mxu0 0.0
  %v1531 = vand.u32 %v834, 4294901760
  %1532 = vmatmul.mubr.f32.gmra.mrb[0].mxu0 %v1531
  %v1533 = vpop.f32.mrb[0].mxu0
  %v1534 = vadd.f32 %v1391, %v1533
  %v1535 = vpop.f32.mrb[0].mxu0
  %1536 = vdwg.mxu0
  %1537 = vmatprep.subr.mxu0 0.0
  %v1538 = vand.u32 %v132, 4294901760
  %1539 = vmatpush1.msra.mxu0 %v1538
  %1540 = vmatprep.subr.mxu0 0.0
  %v1541 = vand.u32 %v133, 4294901760
  %1542 = vmatpush1.msra.mxu0 %v1541
  %1543 = vmatprep.subr.mxu0 0.0
  %v1544 = vand.u32 %v134, 4294901760
  %1545 = vmatpush1.msra.mxu0 %v1544
  %1546 = vmatprep.subr.mxu0 0.0
  %v1547 = vand.u32 %v135, 4294901760
  %1548 = vmatpush1.msra.mxu0 %v1547
  %1549 = vmatprep.subr.mxu0 0.0
  %v1550 = vand.u32 %v136, 4294901760
  %1551 = vmatpush1.msra.mxu0 %v1550
  %1552 = vmatprep.subr.mxu0 0.0
  %v1553 = vand.u32 %v137, 4294901760
  %1554 = vmatpush1.msra.mxu0 %v1553
  %1555 = vmatprep.subr.mxu0 0.0
  %v1556 = vand.u32 %v138, 4294901760
  %1557 = vmatpush1.msra.mxu0 %v1556
  %1558 = vmatprep.subr.mxu0 0.0
  %v1559 = vand.u32 %v139, 4294901760
  %1560 = vmatpush1.msra.mxu0 %v1559
  %1561 = vmatprep.subr.mxu0 0.0
  %v1562 = vand.u32 %v140, 4294901760
  %1563 = vmatpush1.msra.mxu0 %v1562
  %1564 = vmatprep.subr.mxu0 0.0
  %v1565 = vand.u32 %v141, 4294901760
  %1566 = vmatpush1.msra.mxu0 %v1565
  %1567 = vmatprep.subr.mxu0 0.0
  %v1568 = vand.u32 %v142, 4294901760
  %1569 = vmatpush1.msra.mxu0 %v1568
  %1570 = vmatprep.subr.mxu0 0.0
  %v1571 = vand.u32 %v143, 4294901760
  %1572 = vmatpush1.msra.mxu0 %v1571
  %1573 = vmatprep.subr.mxu0 0.0
  %v1574 = vand.u32 %v144, 4294901760
  %1575 = vmatpush1.msra.mxu0 %v1574
  %1576 = vmatprep.subr.mxu0 0.0
  %v1577 = vand.u32 %v145, 4294901760
  %1578 = vmatpush1.msra.mxu0 %v1577
  %1579 = vmatprep.subr.mxu0 0.0
  %v1580 = vand.u32 %v146, 4294901760
  %1581 = vmatpush1.msra.mxu0 %v1580
  %1582 = vmatprep.subr.mxu0 0.0
  %v1583 = vand.u32 %v147, 4294901760
  %1584 = vmatpush1.msra.mxu0 %v1583
  %1585 = vmatprep.subr.mxu0 0.0
  %1586 = vmatpush1.msra.mxu0 0.0
  %1587 = vmatprep.subr.mxu0 0.0
  %1588 = vmatpush1.msra.mxu0 0.0
  %1589 = vmatprep.subr.mxu0 0.0
  %1590 = vmatpush1.msra.mxu0 0.0
  %1591 = vmatprep.subr.mxu0 0.0
  %1592 = vmatpush1.msra.mxu0 0.0
  %1593 = vmatprep.subr.mxu0 0.0
  %1594 = vmatpush1.msra.mxu0 0.0
  %1595 = vmatprep.subr.mxu0 0.0
  %1596 = vmatpush1.msra.mxu0 0.0
  %1597 = vmatprep.subr.mxu0 0.0
  %1598 = vmatpush1.msra.mxu0 0.0
  %1599 = vmatprep.subr.mxu0 0.0
  %1600 = vmatpush1.msra.mxu0 0.0
  %1601 = vmatprep.subr.mxu0 0.0
  %1602 = vmatpush1.msra.mxu0 0.0
  %1603 = vmatprep.subr.mxu0 0.0
  %1604 = vmatpush1.msra.mxu0 0.0
  %1605 = vmatprep.subr.mxu0 0.0
  %1606 = vmatpush1.msra.mxu0 0.0
  %1607 = vmatprep.subr.mxu0 0.0
  %1608 = vmatpush1.msra.mxu0 0.0
  %1609 = vmatprep.subr.mxu0 0.0
  %1610 = vmatpush1.msra.mxu0 0.0
  %1611 = vmatprep.subr.mxu0 0.0
  %1612 = vmatpush1.msra.mxu0 0.0
  %1613 = vmatprep.subr.mxu0 0.0
  %1614 = vmatpush1.msra.mxu0 0.0
  %1615 = vmatprep.subr.mxu0 0.0
  %1616 = vmatpush1.msra.mxu0 0.0
  %1617 = vmatprep.mubr.f32.mxu0 0.0
  %v1618 = vand.u32 %v830, 4294901760
  %1619 = vmatmul.mubr.f32.gmra.mrb[0].mxu0 %v1618
  %v1620 = vpop.f32.mrb[0].mxu0
  %v1621 = vadd.f32 %v1510, %v1620
  %v1622 = vpop.f32.mrb[0].mxu0
  %1623 = vmatprep.mubr.f32.mxu0 0.0
  %v1624 = vand.u32 %v831, 4294901760
  %1625 = vmatmul.mubr.f32.gmra.mrb[0].mxu0 %v1624
  %v1626 = vpop.f32.mrb[0].mxu0
  %v1627 = vadd.f32 %v1516, %v1626
  %v1628 = vpop.f32.mrb[0].mxu0
  %1629 = vmatprep.mubr.f32.mxu0 0.0
  %v1630 = vand.u32 %v832, 4294901760
  %1631 = vmatmul.mubr.f32.gmra.mrb[0].mxu0 %v1630
  %v1632 = vpop.f32.mrb[0].mxu0
  %v1633 = vadd.f32 %v1522, %v1632
  %v1634 = vpop.f32.mrb[0].mxu0
  %1635 = vmatprep.mubr.f32.mxu0 0.0
  %v1636 = vand.u32 %v833, 4294901760
  %1637 = vmatmul.mubr.f32.gmra.mrb[0].mxu0 %v1636
  %v1638 = vpop.f32.mrb[0].mxu0
  %v1639 = vadd.f32 %v1528, %v1638
  %v1640 = vpop.f32.mrb[0].mxu0
  %1641 = vmatprep.mubr.f32.mxu0 0.0
  %v1642 = vand.u32 %v834, 4294901760
  %1643 = vmatmul.mubr.f32.gmra.mrb[0].mxu0 %v1642
  %v1644 = vpop.f32.mrb[0].mxu0
  %v1645 = vadd.f32 %v1534, %v1644
  %v1646 = vpop.f32.mrb[0].mxu0
  %1647 = vdwg.mxu0
  %v1648 = vmul.f32 %v803, %v1621
  %v1649 = vmul.f32 %v809, %v1627
  %v1650 = vmul.f32 %v815, %v1633
  %v1651 = vmul.f32 %v821, %v1639
  %v1652 = vmul.f32 %v827, %v1645
  %v1653 = vadd.f32 %v1648, %v1649
  %v1654 = vadd.f32 %v1653, %v1650
  %v1655 = vadd.f32 %v1654, %v1651
  %vm1656 = vcmask 1040384
  %v1657 = vsel %vm1656, %v1652, 0.0
  %v1658 = vadd.f32 %v1655, %v1657
  %v1659 = vrot.slane %v1658, 4
  %v1660 = vadd.f32 %v1658, %v1659
  %v1661 = vrot.slane %v1660, 2
  %v1662 = vadd.f32 %v1660, %v1661
  %v1663 = vrot.slane %v1662, 1
  %v1664 = vadd.f32 %v1662, %v1663
  %1665 = vst [vmem:[%s5] sm:$0x1] %v1664
  // Predicated region
  $region22: #{bpr_forward.1} parent=0 // pred_check
    _
  $region23: #{bpr_forward.1} parent=0 // pred_check_branch
    %1667 = sbr.rel (0) target = $region25
  $region24: #{bpr_forward.1} parent=0 // pred_region
    _
  $region25: #{bpr_forward.1} parent=0 // pred_fallthru
    _
  // Predicated region
  $region26: #{bpr_forward.1} parent=0 // pred_check
    _
  $region27: #{bpr_forward.1} parent=0 // pred_check_branch
    %1669 = sbr.rel (0) target = $region29
  $region28: #{bpr_forward.1} parent=0 // pred_region
    _
  $region29: #{bpr_forward.1} parent=0 // pred_fallthru
    _

</llo_original>
